<compile_context>
chip_gen: v6e
topology: v6e:2x2x1
jax: 0.10.0
libtpu: 0.0.40
codegen_flags: <defaults>
</compile_context>

<pallas_src>
import jax
import jax.numpy as jnp
from jax import lax
from jax.experimental import pallas as pl
from jax.experimental.pallas import tpu as pltpu

C_IN = 64
C_OUT = 9
KH = KW = 3
BN_EPS = 1e-5


def _round_up(x, m):
    return (x + m - 1) // m * m


def _shift_left(y, s):
    # out[:, i] = y[:, i + s]; the trailing s lanes become zero. Any garbage/zero only
    # lands in per-sample pad columns (>= OW), which the wrapper discards.
    if s == 0:
        return y
    tail = jnp.zeros((y.shape[0], s), y.dtype)
    return jnp.concatenate([y[:, s:], tail], axis=-1)


def _make_kernel(OH, lanes):
    def kernel(x_ref, w_ref, b_ref, o_ref):
        # x_ref: (H*C_IN, lanes) bf16   row = h*C_IN + c, lane = sample*WPAD + w
        # w_ref: (KW, C_OUT, KH*C_IN) bf16  (BN folded into the weights)
        # b_ref: (C_OUT, 1) f32 folded conv+BN bias
        # o_ref: (C_OUT, lanes) f32 pooled (mean over H) post-ReLU conv features
        w0 = w_ref[0]
        w1 = w_ref[1]
        w2 = w_ref[2]
        bias = jnp.broadcast_to(b_ref[...], (C_OUT, lanes))   # hoisted, built once
        m = jnp.zeros((C_OUT, lanes), jnp.float32)
        for oh in range(OH):                                   # static unrolled, OH small
            xs = x_ref[oh * C_IN:(oh + KH) * C_IN, :]          # (192, lanes), aligned slice
            y0 = jnp.dot(w0, xs, preferred_element_type=jnp.float32)
            y1 = jnp.dot(w1, xs, preferred_element_type=jnp.float32)
            y2 = jnp.dot(w2, xs, preferred_element_type=jnp.float32)
            # kw alignment on the small output: acc[:, j] = y0[j] + y1[j+1] + y2[j+2]
            row = y0 + _shift_left(y1, 1) + _shift_left(y2, 2) + bias
            m = m + jnp.maximum(row, 0.0)                      # ReLU + H-mean accumulate
        o_ref[...] = m * (1.0 / OH)

    return kernel


def eegwavenet_forward(params, x, env0, env1, *, batch_block=16):
    del env0, env1  # unused by the PyTorch forward
    N, cin, H, W = x.shape
    assert cin == C_IN and H >= KH and W >= KW
    OH, OW = H - (KH - 1), W - (KW - 1)
    assert params["lin_w"].shape == (2, C_OUT * OW)

    WPAD = _round_up(W, 64)                                   # per-sample lane window
    B = max(2, min(_round_up(batch_block, 2), _round_up(N, 2)))  # even batch block
    N_pad = _round_up(N, B)
    lanes = B * WPAD                                          # multiple of 128
    n_blocks = N_pad // B

    # ---- glue (plain XLA, once): layout + parameter folding ----
    # TODO(synk): the (N,C,H,W)->(H,C,N,W) transpose is an extra HBM pass over x; fuse it
    # into the upstream producer if x is generated on-device.
    xt = jnp.transpose(x, (2, 1, 0, 3))                       # (H, C_IN, N, W)
    xt = jnp.pad(xt, ((0, 0), (0, 0), (0, N_pad - N), (0, WPAD - W)))
    xt = xt.reshape(H * C_IN, N_pad * WPAD).astype(jnp.bfloat16)

    bn_scale = params["bn_gamma"] / jnp.sqrt(params["bn_var"] + BN_EPS)         # (C_OUT,)
    w_fold = params["conv_w"] * bn_scale[:, None, None, None]                   # (9,64,3,3)
    b_fold = ((params["conv_b"] - params["bn_mean"]) * bn_scale
              + params["bn_beta"]).reshape(C_OUT, 1).astype(jnp.float32)
    # (KW, C_OUT, KH*C_IN) with contraction index kh*C_IN + c, matching the x row layout.
    w2 = jnp.transpose(w_fold, (3, 0, 2, 1)).reshape(KW, C_OUT, KH * C_IN)
    w2 = w2.astype(jnp.bfloat16)

    pooled = pl.pallas_call(
        _make_kernel(OH, lanes),
        out_shape=jax.ShapeDtypeStruct((C_OUT, N_pad * WPAD), jnp.float32),
        grid=(n_blocks,),
        in_specs=[
            pl.BlockSpec((H * C_IN, lanes), lambda b: (0, b)),
            pl.BlockSpec((KW, C_OUT, KH * C_IN), lambda b: (0, 0, 0)),
            pl.BlockSpec((C_OUT, 1), lambda b: (0, 0)),
        ],
        out_specs=pl.BlockSpec((C_OUT, lanes), lambda b: (0, b)),
        compiler_params=pltpu.CompilerParams(
            dimension_semantics=("parallel",),
            vmem_limit_bytes=32 * 1024 * 1024,
        ),
    )(xt, w2, b_fold)

    # Tiny 423->2 linear on the pooled features, in plain XLA (review option c).
    pooled = pooled.reshape(C_OUT, N_pad, WPAD)[:, :N, :OW]   # (C_OUT, N, OW)
    lin_w = params["lin_w"].reshape(2, C_OUT, OW)
    return jnp.einsum("cnw,kcw->nk", pooled, lin_w) + params["lin_b"][None, :]


def eegwavenet_reference(params, x):
    # Pure-JAX f32 reference of the same forward semantics (inference-mode BN).
    y = lax.conv_general_dilated(
        x, params["conv_w"], window_strides=(1, 1), padding="VALID",
        dimension_numbers=("NCHW", "OIHW", "NCHW"))
    y = y + params["conv_b"][None, :, None, None]
    scale = params["bn_gamma"] / jnp.sqrt(params["bn_var"] + BN_EPS)
    shift = params["bn_beta"] - params["bn_mean"] * scale
    y = y * scale[None, :, None, None] + shift[None, :, None, None]
    y = jnp.maximum(y, 0.0)
    y = jnp.mean(y, axis=2).reshape(x.shape[0], -1)
    return y @ params["lin_w"].T + params["lin_b"]


if __name__ == "__main__":
    key = jax.random.PRNGKey(0)
    ks = jax.random.split(key, 10)
    # Linear(9*47, 2) forces conv output width 47 -> input W = 49.
    N, H, W = 6, 8, 49
    x = jax.random.normal(ks[0], (N, C_IN, H, W), jnp.float32)
    env0 = jax.random.normal(ks[1], (N, 128), jnp.float32)   # unused by forward
    env1 = jax.random.normal(ks[2], (N, 128), jnp.float32)   # unused by forward

    params = {
        "conv_w": 0.05 * jax.random.normal(ks[3], (C_OUT, C_IN, KH, KW), jnp.float32),
        "conv_b": 0.05 * jax.random.normal(ks[4], (C_OUT,), jnp.float32),
        "bn_gamma": jax.random.uniform(ks[5], (C_OUT,), jnp.float32, 0.5, 1.5),
        "bn_beta": 0.1 * jax.random.normal(ks[6], (C_OUT,), jnp.float32),
        "bn_mean": 0.1 * jax.random.normal(ks[7], (C_OUT,), jnp.float32),
        "bn_var": jax.random.uniform(ks[8], (C_OUT,), jnp.float32, 0.5, 1.5),
        "lin_w": 0.05 * jax.random.normal(ks[9], (2, C_OUT * (W - 2)), jnp.float32),
        "lin_b": jnp.array([0.01, -0.02], jnp.float32),
    }

    ref = eegwavenet_reference(params, x)

    # Multi-block path: 2 samples per grid step -> grid=(3,).
    out = jax.block_until_ready(eegwavenet_forward(params, x, env0, env1, batch_block=2))
    assert out.shape == (N, 2)
    assert jnp.allclose(out, ref, rtol=1e-2, atol=1e-2), (out, ref)

    # Ragged path: N=3 not a multiple of the (even) batch block -> padded inside wrapper.
    out2 = jax.block_until_ready(
        eegwavenet_forward(params, x[:3], env0[:3], env1[:3]))
    assert out2.shape == (3, 2)
    assert jnp.allclose(out2, ref[:3], rtol=1e-2, atol=1e-2), (out2, ref[:3])

    print("KERNEL_OK")
</pallas_src>

<mosaic_0001>
module attributes {stable_mosaic.version = 11 : i64} {
  func.func @kernel(%arg0: i32, %arg1: memref<512x128xbf16, #tpu.memory_space<vmem>>, %arg2: memref<3x9x192xbf16, #tpu.memory_space<vmem>>, %arg3: memref<9x1xf32, #tpu.memory_space<vmem>>, %arg4: memref<9x128xf32, #tpu.memory_space<vmem>>) attributes {dimension_semantics = [#tpu.dimension_semantics<parallel>], iteration_bounds = array<i64: 3>, scalar_prefetch = 0 : i64, scratch_operands = 0 : i64, tpu.core_type = #tpu.core_type<tc>, window_params = [{transform_indices = @transform_0, window_bounds = array<i64: 512, 128>}, {pipeline_mode = #tpu.pipeline_mode<synchronous>, transform_indices = @transform_1, window_bounds = array<i64: 3, 9, 192>}, {pipeline_mode = #tpu.pipeline_mode<synchronous>, transform_indices = @transform_2, window_bounds = array<i64: 9, 1>}, {transform_indices = @transform_3, window_bounds = array<i64: 9, 128>}]} {
    %c0 = arith.constant 0 : index
    %c0_0 = arith.constant 0 : index
    %c0_1 = arith.constant 0 : index
    %0 = vector.load %arg2[%c0, %c0_0, %c0_1] : memref<3x9x192xbf16, #tpu.memory_space<vmem>>, vector<1x9x192xbf16>
    %1 = vector.shape_cast %0 : vector<1x9x192xbf16> to vector<9x192xbf16>
    %c1 = arith.constant 1 : index
    %c0_2 = arith.constant 0 : index
    %c0_3 = arith.constant 0 : index
    %2 = vector.load %arg2[%c1, %c0_2, %c0_3] : memref<3x9x192xbf16, #tpu.memory_space<vmem>>, vector<1x9x192xbf16>
    %3 = vector.shape_cast %2 : vector<1x9x192xbf16> to vector<9x192xbf16>
    %c2 = arith.constant 2 : index
    %c0_4 = arith.constant 0 : index
    %c0_5 = arith.constant 0 : index
    %4 = vector.load %arg2[%c2, %c0_4, %c0_5] : memref<3x9x192xbf16, #tpu.memory_space<vmem>>, vector<1x9x192xbf16>
    %5 = vector.shape_cast %4 : vector<1x9x192xbf16> to vector<9x192xbf16>
    %c0_6 = arith.constant 0 : index
    %c0_7 = arith.constant 0 : index
    %6 = vector.load %arg3[%c0_6, %c0_7] : memref<9x1xf32, #tpu.memory_space<vmem>>, vector<9x1xf32>
    %7 = vector.shape_cast %6 : vector<9x1xf32> to vector<9x1xf32>
    %8 = vector.broadcast %7 : vector<9x1xf32> to vector<9x128xf32>
    %cst = arith.constant 0.000000e+00 : f32
    %9 = vector.broadcast %cst : f32 to vector<9x128xf32>
    %c0_8 = arith.constant 0 : index
    %c0_9 = arith.constant 0 : index
    %10 = vector.load %arg1[%c0_8, %c0_9] : memref<512x128xbf16, #tpu.memory_space<vmem>>, vector<192x128xbf16>
    %cst_10 = arith.constant dense<0.000000e+00> : vector<9x128xf32>
    %11 = tpu.matmul %1, %10, %cst_10 {dimension_numbers = #tpu.dot_dimension_numbers<[1], [0], [0], [1], [0, 0, 1, 1], [], []>} : vector<9x192xbf16>, vector<192x128xbf16>, vector<9x128xf32> -> vector<9x128xf32>
    %cst_11 = arith.constant dense<0.000000e+00> : vector<9x128xf32>
    %12 = tpu.matmul %3, %10, %cst_11 {dimension_numbers = #tpu.dot_dimension_numbers<[1], [0], [0], [1], [0, 0, 1, 1], [], []>} : vector<9x192xbf16>, vector<192x128xbf16>, vector<9x128xf32> -> vector<9x128xf32>
    %cst_12 = arith.constant dense<0.000000e+00> : vector<9x128xf32>
    %13 = tpu.matmul %5, %10, %cst_12 {dimension_numbers = #tpu.dot_dimension_numbers<[1], [0], [0], [1], [0, 0, 1, 1], [], []>} : vector<9x192xbf16>, vector<192x128xbf16>, vector<9x128xf32> -> vector<9x128xf32>
    %cst_13 = arith.constant 0.000000e+00 : f32
    %14 = vector.broadcast %cst_13 : f32 to vector<9x1xf32>
    %15 = vector.extract_strided_slice %12 {offsets = [0, 1], sizes = [9, 127], strides = [1, 1]} : vector<9x128xf32> to vector<9x127xf32>
    %16 = tpu.concatenate %15, %14 in 1 : vector<9x127xf32>, vector<9x1xf32> -> vector<9x128xf32>
    %17 = arith.addf %11, %16 : vector<9x128xf32>
    %cst_14 = arith.constant 0.000000e+00 : f32
    %18 = vector.broadcast %cst_14 : f32 to vector<9x2xf32>
    %19 = vector.extract_strided_slice %13 {offsets = [0, 2], sizes = [9, 126], strides = [1, 1]} : vector<9x128xf32> to vector<9x126xf32>
    %20 = tpu.concatenate %19, %18 in 1 : vector<9x126xf32>, vector<9x2xf32> -> vector<9x128xf32>
    %21 = arith.addf %17, %20 : vector<9x128xf32>
    %22 = arith.addf %21, %8 : vector<9x128xf32>
    %cst_15 = arith.constant 0.000000e+00 : f32
    %23 = vector.broadcast %cst_15 : f32 to vector<9x128xf32>
    %24 = arith.maximumf %22, %23 : vector<9x128xf32>
    %25 = arith.addf %9, %24 : vector<9x128xf32>
    %c64 = arith.constant 64 : index
    %c0_16 = arith.constant 0 : index
    %26 = vector.load %arg1[%c64, %c0_16] : memref<512x128xbf16, #tpu.memory_space<vmem>>, vector<192x128xbf16>
    %cst_17 = arith.constant dense<0.000000e+00> : vector<9x128xf32>
    %27 = tpu.matmul %1, %26, %cst_17 {dimension_numbers = #tpu.dot_dimension_numbers<[1], [0], [0], [1], [0, 0, 1, 1], [], []>} : vector<9x192xbf16>, vector<192x128xbf16>, vector<9x128xf32> -> vector<9x128xf32>
    %cst_18 = arith.constant dense<0.000000e+00> : vector<9x128xf32>
    %28 = tpu.matmul %3, %26, %cst_18 {dimension_numbers = #tpu.dot_dimension_numbers<[1], [0], [0], [1], [0, 0, 1, 1], [], []>} : vector<9x192xbf16>, vector<192x128xbf16>, vector<9x128xf32> -> vector<9x128xf32>
    %cst_19 = arith.constant dense<0.000000e+00> : vector<9x128xf32>
    %29 = tpu.matmul %5, %26, %cst_19 {dimension_numbers = #tpu.dot_dimension_numbers<[1], [0], [0], [1], [0, 0, 1, 1], [], []>} : vector<9x192xbf16>, vector<192x128xbf16>, vector<9x128xf32> -> vector<9x128xf32>
    %cst_20 = arith.constant 0.000000e+00 : f32
    %30 = vector.broadcast %cst_20 : f32 to vector<9x1xf32>
    %31 = vector.extract_strided_slice %28 {offsets = [0, 1], sizes = [9, 127], strides = [1, 1]} : vector<9x128xf32> to vector<9x127xf32>
    %32 = tpu.concatenate %31, %30 in 1 : vector<9x127xf32>, vector<9x1xf32> -> vector<9x128xf32>
    %33 = arith.addf %27, %32 : vector<9x128xf32>
    %cst_21 = arith.constant 0.000000e+00 : f32
    %34 = vector.broadcast %cst_21 : f32 to vector<9x2xf32>
    %35 = vector.extract_strided_slice %29 {offsets = [0, 2], sizes = [9, 126], strides = [1, 1]} : vector<9x128xf32> to vector<9x126xf32>
    %36 = tpu.concatenate %35, %34 in 1 : vector<9x126xf32>, vector<9x2xf32> -> vector<9x128xf32>
    %37 = arith.addf %33, %36 : vector<9x128xf32>
    %38 = arith.addf %37, %8 : vector<9x128xf32>
    %cst_22 = arith.constant 0.000000e+00 : f32
    %39 = vector.broadcast %cst_22 : f32 to vector<9x128xf32>
    %40 = arith.maximumf %38, %39 : vector<9x128xf32>
    %41 = arith.addf %25, %40 : vector<9x128xf32>
    %c128 = arith.constant 128 : index
    %c0_23 = arith.constant 0 : index
    %42 = vector.load %arg1[%c128, %c0_23] : memref<512x128xbf16, #tpu.memory_space<vmem>>, vector<192x128xbf16>
    %cst_24 = arith.constant dense<0.000000e+00> : vector<9x128xf32>
    %43 = tpu.matmul %1, %42, %cst_24 {dimension_numbers = #tpu.dot_dimension_numbers<[1], [0], [0], [1], [0, 0, 1, 1], [], []>} : vector<9x192xbf16>, vector<192x128xbf16>, vector<9x128xf32> -> vector<9x128xf32>
    %cst_25 = arith.constant dense<0.000000e+00> : vector<9x128xf32>
    %44 = tpu.matmul %3, %42, %cst_25 {dimension_numbers = #tpu.dot_dimension_numbers<[1], [0], [0], [1], [0, 0, 1, 1], [], []>} : vector<9x192xbf16>, vector<192x128xbf16>, vector<9x128xf32> -> vector<9x128xf32>
    %cst_26 = arith.constant dense<0.000000e+00> : vector<9x128xf32>
    %45 = tpu.matmul %5, %42, %cst_26 {dimension_numbers = #tpu.dot_dimension_numbers<[1], [0], [0], [1], [0, 0, 1, 1], [], []>} : vector<9x192xbf16>, vector<192x128xbf16>, vector<9x128xf32> -> vector<9x128xf32>
    %cst_27 = arith.constant 0.000000e+00 : f32
    %46 = vector.broadcast %cst_27 : f32 to vector<9x1xf32>
    %47 = vector.extract_strided_slice %44 {offsets = [0, 1], sizes = [9, 127], strides = [1, 1]} : vector<9x128xf32> to vector<9x127xf32>
    %48 = tpu.concatenate %47, %46 in 1 : vector<9x127xf32>, vector<9x1xf32> -> vector<9x128xf32>
    %49 = arith.addf %43, %48 : vector<9x128xf32>
    %cst_28 = arith.constant 0.000000e+00 : f32
    %50 = vector.broadcast %cst_28 : f32 to vector<9x2xf32>
    %51 = vector.extract_strided_slice %45 {offsets = [0, 2], sizes = [9, 126], strides = [1, 1]} : vector<9x128xf32> to vector<9x126xf32>
    %52 = tpu.concatenate %51, %50 in 1 : vector<9x126xf32>, vector<9x2xf32> -> vector<9x128xf32>
    %53 = arith.addf %49, %52 : vector<9x128xf32>
    %54 = arith.addf %53, %8 : vector<9x128xf32>
    %cst_29 = arith.constant 0.000000e+00 : f32
    %55 = vector.broadcast %cst_29 : f32 to vector<9x128xf32>
    %56 = arith.maximumf %54, %55 : vector<9x128xf32>
    %57 = arith.addf %41, %56 : vector<9x128xf32>
    %c192 = arith.constant 192 : index
    %c0_30 = arith.constant 0 : index
    %58 = vector.load %arg1[%c192, %c0_30] : memref<512x128xbf16, #tpu.memory_space<vmem>>, vector<192x128xbf16>
    %cst_31 = arith.constant dense<0.000000e+00> : vector<9x128xf32>
    %59 = tpu.matmul %1, %58, %cst_31 {dimension_numbers = #tpu.dot_dimension_numbers<[1], [0], [0], [1], [0, 0, 1, 1], [], []>} : vector<9x192xbf16>, vector<192x128xbf16>, vector<9x128xf32> -> vector<9x128xf32>
    %cst_32 = arith.constant dense<0.000000e+00> : vector<9x128xf32>
    %60 = tpu.matmul %3, %58, %cst_32 {dimension_numbers = #tpu.dot_dimension_numbers<[1], [0], [0], [1], [0, 0, 1, 1], [], []>} : vector<9x192xbf16>, vector<192x128xbf16>, vector<9x128xf32> -> vector<9x128xf32>
    %cst_33 = arith.constant dense<0.000000e+00> : vector<9x128xf32>
    %61 = tpu.matmul %5, %58, %cst_33 {dimension_numbers = #tpu.dot_dimension_numbers<[1], [0], [0], [1], [0, 0, 1, 1], [], []>} : vector<9x192xbf16>, vector<192x128xbf16>, vector<9x128xf32> -> vector<9x128xf32>
    %cst_34 = arith.constant 0.000000e+00 : f32
    %62 = vector.broadcast %cst_34 : f32 to vector<9x1xf32>
    %63 = vector.extract_strided_slice %60 {offsets = [0, 1], sizes = [9, 127], strides = [1, 1]} : vector<9x128xf32> to vector<9x127xf32>
    %64 = tpu.concatenate %63, %62 in 1 : vector<9x127xf32>, vector<9x1xf32> -> vector<9x128xf32>
    %65 = arith.addf %59, %64 : vector<9x128xf32>
    %cst_35 = arith.constant 0.000000e+00 : f32
    %66 = vector.broadcast %cst_35 : f32 to vector<9x2xf32>
    %67 = vector.extract_strided_slice %61 {offsets = [0, 2], sizes = [9, 126], strides = [1, 1]} : vector<9x128xf32> to vector<9x126xf32>
    %68 = tpu.concatenate %67, %66 in 1 : vector<9x126xf32>, vector<9x2xf32> -> vector<9x128xf32>
    %69 = arith.addf %65, %68 : vector<9x128xf32>
    %70 = arith.addf %69, %8 : vector<9x128xf32>
    %cst_36 = arith.constant 0.000000e+00 : f32
    %71 = vector.broadcast %cst_36 : f32 to vector<9x128xf32>
    %72 = arith.maximumf %70, %71 : vector<9x128xf32>
    %73 = arith.addf %57, %72 : vector<9x128xf32>
    %c256 = arith.constant 256 : index
    %c0_37 = arith.constant 0 : index
    %74 = vector.load %arg1[%c256, %c0_37] : memref<512x128xbf16, #tpu.memory_space<vmem>>, vector<192x128xbf16>
    %cst_38 = arith.constant dense<0.000000e+00> : vector<9x128xf32>
    %75 = tpu.matmul %1, %74, %cst_38 {dimension_numbers = #tpu.dot_dimension_numbers<[1], [0], [0], [1], [0, 0, 1, 1], [], []>} : vector<9x192xbf16>, vector<192x128xbf16>, vector<9x128xf32> -> vector<9x128xf32>
    %cst_39 = arith.constant dense<0.000000e+00> : vector<9x128xf32>
    %76 = tpu.matmul %3, %74, %cst_39 {dimension_numbers = #tpu.dot_dimension_numbers<[1], [0], [0], [1], [0, 0, 1, 1], [], []>} : vector<9x192xbf16>, vector<192x128xbf16>, vector<9x128xf32> -> vector<9x128xf32>
    %cst_40 = arith.constant dense<0.000000e+00> : vector<9x128xf32>
    %77 = tpu.matmul %5, %74, %cst_40 {dimension_numbers = #tpu.dot_dimension_numbers<[1], [0], [0], [1], [0, 0, 1, 1], [], []>} : vector<9x192xbf16>, vector<192x128xbf16>, vector<9x128xf32> -> vector<9x128xf32>
    %cst_41 = arith.constant 0.000000e+00 : f32
    %78 = vector.broadcast %cst_41 : f32 to vector<9x1xf32>
    %79 = vector.extract_strided_slice %76 {offsets = [0, 1], sizes = [9, 127], strides = [1, 1]} : vector<9x128xf32> to vector<9x127xf32>
    %80 = tpu.concatenate %79, %78 in 1 : vector<9x127xf32>, vector<9x1xf32> -> vector<9x128xf32>
    %81 = arith.addf %75, %80 : vector<9x128xf32>
    %cst_42 = arith.constant 0.000000e+00 : f32
    %82 = vector.broadcast %cst_42 : f32 to vector<9x2xf32>
    %83 = vector.extract_strided_slice %77 {offsets = [0, 2], sizes = [9, 126], strides = [1, 1]} : vector<9x128xf32> to vector<9x126xf32>
    %84 = tpu.concatenate %83, %82 in 1 : vector<9x126xf32>, vector<9x2xf32> -> vector<9x128xf32>
    %85 = arith.addf %81, %84 : vector<9x128xf32>
    %86 = arith.addf %85, %8 : vector<9x128xf32>
    %cst_43 = arith.constant 0.000000e+00 : f32
    %87 = vector.broadcast %cst_43 : f32 to vector<9x128xf32>
    %88 = arith.maximumf %86, %87 : vector<9x128xf32>
    %89 = arith.addf %73, %88 : vector<9x128xf32>
    %c320 = arith.constant 320 : index
    %c0_44 = arith.constant 0 : index
    %90 = vector.load %arg1[%c320, %c0_44] : memref<512x128xbf16, #tpu.memory_space<vmem>>, vector<192x128xbf16>
    %cst_45 = arith.constant dense<0.000000e+00> : vector<9x128xf32>
    %91 = tpu.matmul %1, %90, %cst_45 {dimension_numbers = #tpu.dot_dimension_numbers<[1], [0], [0], [1], [0, 0, 1, 1], [], []>} : vector<9x192xbf16>, vector<192x128xbf16>, vector<9x128xf32> -> vector<9x128xf32>
    %cst_46 = arith.constant dense<0.000000e+00> : vector<9x128xf32>
    %92 = tpu.matmul %3, %90, %cst_46 {dimension_numbers = #tpu.dot_dimension_numbers<[1], [0], [0], [1], [0, 0, 1, 1], [], []>} : vector<9x192xbf16>, vector<192x128xbf16>, vector<9x128xf32> -> vector<9x128xf32>
    %cst_47 = arith.constant dense<0.000000e+00> : vector<9x128xf32>
    %93 = tpu.matmul %5, %90, %cst_47 {dimension_numbers = #tpu.dot_dimension_numbers<[1], [0], [0], [1], [0, 0, 1, 1], [], []>} : vector<9x192xbf16>, vector<192x128xbf16>, vector<9x128xf32> -> vector<9x128xf32>
    %cst_48 = arith.constant 0.000000e+00 : f32
    %94 = vector.broadcast %cst_48 : f32 to vector<9x1xf32>
    %95 = vector.extract_strided_slice %92 {offsets = [0, 1], sizes = [9, 127], strides = [1, 1]} : vector<9x128xf32> to vector<9x127xf32>
    %96 = tpu.concatenate %95, %94 in 1 : vector<9x127xf32>, vector<9x1xf32> -> vector<9x128xf32>
    %97 = arith.addf %91, %96 : vector<9x128xf32>
    %cst_49 = arith.constant 0.000000e+00 : f32
    %98 = vector.broadcast %cst_49 : f32 to vector<9x2xf32>
    %99 = vector.extract_strided_slice %93 {offsets = [0, 2], sizes = [9, 126], strides = [1, 1]} : vector<9x128xf32> to vector<9x126xf32>
    %100 = tpu.concatenate %99, %98 in 1 : vector<9x126xf32>, vector<9x2xf32> -> vector<9x128xf32>
    %101 = arith.addf %97, %100 : vector<9x128xf32>
    %102 = arith.addf %101, %8 : vector<9x128xf32>
    %cst_50 = arith.constant 0.000000e+00 : f32
    %103 = vector.broadcast %cst_50 : f32 to vector<9x128xf32>
    %104 = arith.maximumf %102, %103 : vector<9x128xf32>
    %105 = arith.addf %89, %104 : vector<9x128xf32>
    %cst_51 = arith.constant 0.166666672 : f32
    %106 = vector.broadcast %cst_51 : f32 to vector<9x128xf32>
    %107 = arith.mulf %105, %106 : vector<9x128xf32>
    %c0_52 = arith.constant 0 : index
    %c0_53 = arith.constant 0 : index
    %108 = vector.load %arg4[%c0_52, %c0_53] : memref<9x128xf32, #tpu.memory_space<vmem>>, vector<9x128xf32>
    tpu.vector_store %arg4[%c0_52, %c0_53], %107 {strides = array<i32>} : memref<9x128xf32, #tpu.memory_space<vmem>>, vector<9x128xf32>,
    return
  }
  func.func @transform_0(%arg0: i32) -> (i32, i32) {
    %c0_i32 = arith.constant 0 : i32
    %c0_i32_0 = arith.constant 0 : i32
    return %c0_i32, %arg0 : i32, i32
  }
  func.func @transform_1(%arg0: i32) -> (i32, i32, i32) {
    %c0_i32 = arith.constant 0 : i32
    %c0_i32_0 = arith.constant 0 : i32
    %c0_i32_1 = arith.constant 0 : i32
    %c0_i32_2 = arith.constant 0 : i32
    return %c0_i32, %c0_i32_0, %c0_i32_1 : i32, i32, i32
  }
  func.func @transform_2(%arg0: i32) -> (i32, i32) {
    %c0_i32 = arith.constant 0 : i32
    %c0_i32_0 = arith.constant 0 : i32
    %c0_i32_1 = arith.constant 0 : i32
    return %c0_i32, %c0_i32_0 : i32, i32
  }
  func.func @transform_3(%arg0: i32) -> (i32, i32) {
    %c0_i32 = arith.constant 0 : i32
    %c0_i32_0 = arith.constant 0 : i32
    return %c0_i32, %arg0 : i32, i32
  }
}

</mosaic_0001>

<llo_original>
// kernel: tpu_custom_call.1
$region0: #{tpu_custom_call.1}
  #allocation0 [shape = 'u32[]', space=smem, size = 0x4, offset = 0x4, fixed_abs, tag = 'smem constant byte address 0x4 - core index']
  #allocation1 [shape = 'u32[144,128]{1,0:T(1,128)}', space=vmem, size = 0x12000, scoped, tag = 'internal scratch']
  %s0 = inlined_call_operand.hbm [shape: bf16[512,384], index: 0, kind: input, shape index: {}]
  %s1 = inlined_call_operand.vmem [shape: bf16[3,9,192], index: 1, kind: input, shape index: {}]
  %s2 = inlined_call_operand.vmem [shape: f32[9,1], index: 2, kind: input, shape index: {}]
  %s3 = inlined_call_operand.hbm [shape: f32[9,384], index: 3, kind: output, shape index: {}]
  %s4 = sld [smem:[#allocation0]]
  $region49: #{tpu_custom_call.1} parent=0
    _
  %s6 = ssub.s32 1, %s4
  %s7 = scalar_select 0, %s6, %s4
  $region1: #{tpu_custom_call.1} parent=0
    #allocation2 [shape = 'u8[262144]{0}', space=vmem, size = 0x40000, scoped, tag = 'input window, operand 0']
    #allocation3 [shape = 's32[2]{0}', space=sflag, size = 0x8, scoped, tag = 'scoped memory for tpu_custom_call.1']
    #allocation4 [shape = 's32[2]{0}', space=sflag, size = 0x8, scoped, tag = 'scoped memory for tpu_custom_call.1']
    #allocation5 [shape = 'u8[16384]{0}', space=vmem, size = 0x4000, scoped, tag = 'output window, operand 0']
    %8 = vsyncpa [#allocation3], 0
    %s9 = scalar_lea.sflag [#allocation3], 1
    %10 = vsyncpa %s9, 0
    %11 = vsyncpa [#allocation4], 0
    %s12 = scalar_lea.sflag [#allocation4], 1
    %13 = vsyncpa %s12, 0
    loop: start=0, step=1, limit=5
    $region2: #{tpu_custom_call.1} parent=1 // loop_pre_header
      _
    $region3: #{tpu_custom_call.1} parent=1 // loop_header
      %s15 = sphi 0, %s19
      %p16 = scmp.ge.s32.totalorder %s15, 5
      %s25 = sphi 0, %s27
      %s28 = sphi 0, %s25
      %s29 = sphi 0, %s28
      %s45 = sphi 0, %s29
      %s49 = sphi 0, %s49
      %s51 = sphi 0, %s49
      %s52 = sphi 0, %s51
      %s66 = sphi 0, %s52
      %s70 = sphi 0, %s70
      %s72 = sphi 0, %s70
      %s73 = sphi 0, %s72
      %s87 = sphi 0, %s73
      %s93 = sphi 0, %s95
      %s96 = sphi 0, %s93
      %s97 = sphi 0, %s96
      %s113 = sphi 0, %s97
    $region4: #{tpu_custom_call.1} parent=1 // loop_header_branch
      %18 = sbr.rel (%p16) target = $region8
    $region5: #{tpu_custom_call.1} parent=1 // loop_body
      %s20 = ssub.s32 %s15, 1
      %s21 = ssub.s32 %s15, 2
      %s22 = sadd.s32 %s15, 1
      %s23 = ssub.s32 %s15, %s22
      %p24 = scmp.eq.s32.totalorder %s23, 0
      %s26 = sadd.s32 %s25, 1
      %s27 = scalar_select %p24, %s25, %s26
      %p30 = pneg %p24
      %p31 = scmp.eq.s32.totalorder %s15, 2
      %p32 = por %p30, %p31
      %p33 = scmp.ne.s32.totalorder %s25, %s28
      %p34 = scmp.eq.s32.totalorder %s15, 0
      %p35 = por %p33, %p34
      %p36 = scmp.ne.s32.totalorder %s25, %s28
      %p37 = scmp.eq.s32.totalorder %s20, 2
      %p38 = por %p36, %p37
      %p39 = scmp.ne.s32.totalorder %s28, %s29
      %p40 = scmp.eq.s32.totalorder %s20, 0
      %p41 = por %p39, %p40
      %p42 = scmp.ne.s32.totalorder %s28, %s29
      %p43 = scmp.eq.s32.totalorder %s21, 2
      %p44 = por %p42, %p43
      %p46 = scmp.ne.s32.totalorder %s29, %s45
      %p47 = scmp.eq.s32.totalorder %s21, 0
      %p48 = por %p46, %p47
      %s50 = sadd.s32 %s49, 1
      %p53 = scmp.eq.s32.totalorder %s15, 2
      %p54 = scmp.ne.s32.totalorder %s49, %s51
      %p55 = scmp.eq.s32.totalorder %s15, 0
      %p56 = por %p54, %p55
      %p57 = scmp.ne.s32.totalorder %s49, %s51
      %p58 = scmp.eq.s32.totalorder %s20, 2
      %p59 = por %p57, %p58
      %p60 = scmp.ne.s32.totalorder %s51, %s52
      %p61 = scmp.eq.s32.totalorder %s20, 0
      %p62 = por %p60, %p61
      %p63 = scmp.ne.s32.totalorder %s51, %s52
      %p64 = scmp.eq.s32.totalorder %s21, 2
      %p65 = por %p63, %p64
      %p67 = scmp.ne.s32.totalorder %s52, %s66
      %p68 = scmp.eq.s32.totalorder %s21, 0
      %p69 = por %p67, %p68
      %s71 = sadd.s32 %s70, 1
      %p74 = scmp.eq.s32.totalorder %s15, 2
      %p75 = scmp.ne.s32.totalorder %s70, %s72
      %p76 = scmp.eq.s32.totalorder %s15, 0
      %p77 = por %p75, %p76
      %p78 = scmp.ne.s32.totalorder %s70, %s72
      %p79 = scmp.eq.s32.totalorder %s20, 2
      %p80 = por %p78, %p79
      %p81 = scmp.ne.s32.totalorder %s72, %s73
      %p82 = scmp.eq.s32.totalorder %s20, 0
      %p83 = por %p81, %p82
      %p84 = scmp.ne.s32.totalorder %s72, %s73
      %p85 = scmp.eq.s32.totalorder %s21, 2
      %p86 = por %p84, %p85
      %p88 = scmp.ne.s32.totalorder %s73, %s87
      %p89 = scmp.eq.s32.totalorder %s21, 0
      %p90 = por %p88, %p89
      %s91 = ssub.s32 %s15, %s22
      %p92 = scmp.eq.s32.totalorder %s91, 0
      %s94 = sadd.s32 %s93, 1
      %s95 = scalar_select %p92, %s93, %s94
      %p98 = pneg %p92
      %p99 = scmp.eq.s32.totalorder %s15, 2
      %p100 = por %p98, %p99
      %p101 = scmp.ne.s32.totalorder %s93, %s96
      %p102 = scmp.eq.s32.totalorder %s15, 0
      %p103 = por %p101, %p102
      %p104 = scmp.ne.s32.totalorder %s93, %s96
      %p105 = scmp.eq.s32.totalorder %s20, 2
      %p106 = por %p104, %p105
      %p107 = scmp.ne.s32.totalorder %s96, %s97
      %p108 = scmp.eq.s32.totalorder %s20, 0
      %p109 = por %p107, %p108
      %p110 = scmp.ne.s32.totalorder %s96, %s97
      %p111 = scmp.eq.s32.totalorder %s21, 2
      %p112 = por %p110, %p111
      %p114 = scmp.ne.s32.totalorder %s97, %s113
      %p115 = scmp.eq.s32.totalorder %s21, 0
      %p116 = por %p114, %p115
      %p117 = scmp.le.s32.totalorder 1, %s15
      %p118 = scmp.lt.s32.totalorder %s15, 4
      %p119 = pnand %p117, %p118
      %p120 = pneg %p119
      // Predicated region
      $region9: #{tpu_custom_call.1} parent=5 // pred_check
        _
      $region10: #{tpu_custom_call.1} parent=5 // pred_check_branch
        %122 = sbr.rel (%p119) target = $region12
      $region11: #{tpu_custom_call.1} parent=5 // pred_region
        %s123 = ssub.s32 %s15, 1
        // Predicated region
        $region13: #{tpu_custom_call.1} parent=11 // pred_check
          %p124 = pneg %p62
        $region14: #{tpu_custom_call.1} parent=11 // pred_check_branch
          %126 = sbr.rel (%p124) target = $region16
        $region15: #{tpu_custom_call.1} parent=11 // pred_region
          _
        $region16: #{tpu_custom_call.1} parent=11 // pred_fallthru
          _
        // Predicated region
        $region17: #{tpu_custom_call.1} parent=11 // pred_check
          %p127 = pneg %p83
        $region18: #{tpu_custom_call.1} parent=11 // pred_check_branch
          %129 = sbr.rel (%p127) target = $region20
        $region19: #{tpu_custom_call.1} parent=11 // pred_region
          _
        $region20: #{tpu_custom_call.1} parent=11 // pred_fallthru
          _
      $region12: #{tpu_custom_call.1} parent=5 // pred_fallthru
        _
      %p130 = scmp.lt.s32.totalorder %s15, 3
      // Predicated region
      $region21: #{tpu_custom_call.1} parent=5 // pred_check
        %p131 = pneg %p130
      $region22: #{tpu_custom_call.1} parent=5 // pred_check_branch
        %133 = sbr.rel (%p131) target = $region24
      $region23: #{tpu_custom_call.1} parent=5 // pred_region
        // Predicated region
        $region25: #{tpu_custom_call.1} parent=23 // pred_check
          %p134 = pneg %p35
        $region26: #{tpu_custom_call.1} parent=23 // pred_check_branch
          %136 = sbr.rel (%p134) target = $region28
        $region27: #{tpu_custom_call.1} parent=23 // pred_region
          %s137 = sand.u32 %s25, 1
          %s138 = scalar_lea.sflag [#allocation3], %s137
          %s139 = sand.u32 %s25, 1
          %s140 = smul.addr %s139, 256
          %s141 = scalar_lea.vmem [#allocation2], %s140
          %s143 = ssub.s32 4096, 4096
          %144 = vsyncadd %s138, %s143
          %s145 = smul.addr %s15, 64
          %s146 = scalar_lea.hbm %s0, %s145
          %s147 = sshll.u32 %s141, 4
          %s148 = int_to_ptr.vmem [resolvable:$true] %s147
          %153 = dma.hbm_to_vmem [thread:$0]  %s146, 4096, %s148, %s138, 192, 64, 4
        $region28: #{tpu_custom_call.1} parent=23 // pred_fallthru
          _
      $region24: #{tpu_custom_call.1} parent=5 // pred_fallthru
        _
      %p154 = scmp.le.s32.totalorder 1, %s15
      %p155 = scmp.lt.s32.totalorder %s15, 4
      %p156 = pnand %p154, %p155
      %p157 = pneg %p156
      // Predicated region
      $region29: #{tpu_custom_call.1} parent=5 // pred_check
        _
      $region30: #{tpu_custom_call.1} parent=5 // pred_check_branch
        %159 = sbr.rel (%p156) target = $region32
      $region31: #{tpu_custom_call.1} parent=5 // pred_region
        %s160 = ssub.s32 %s15, 1
        %s161 = sand.u32 %s28, 1
        %s162 = scalar_lea.sflag [#allocation3], %s161
        %s163 = sand.u32 %s28, 1
        %s164 = smul.addr %s163, 256
        %s165 = scalar_lea.vmem [#allocation2], %s164
        // Predicated region
        $region33: #{tpu_custom_call.1} parent=31 // pred_check
          %p166 = pneg %p41
        $region34: #{tpu_custom_call.1} parent=31 // pred_check_branch
          %168 = sbr.rel (%p166) target = $region36
        $region35: #{tpu_custom_call.1} parent=31 // pred_region
          %169 = dma.done %s162, 4096
        $region36: #{tpu_custom_call.1} parent=31 // pred_fallthru
          _
        %s170 = sand.u32 %s28, 1
        %s171 = scalar_lea.sflag [#allocation3], %s170
        %s172 = sand.u32 %s28, 1
        %s173 = smul.addr %s172, 256
        %s174 = scalar_lea.vmem [#allocation2], %s173
        %p175 = pneg %p41
        %p176 = pneg %p38
        %p177 = pneg %p62
        %p178 = pneg %p59
        %p179 = pneg %p83
        %p180 = pneg %p80
        %p181 = pneg %p109
        %p182 = pneg %p106
        %s183 = sand.u32 %s96, 1
        %s184 = scalar_lea.sflag [#allocation4], %s183
        %s185 = sand.u32 %s96, 1
        %s186 = smul.addr %s185, 16
        %s187 = scalar_lea.vmem [#allocation5], %s186
        %v189 = vld [vmem:[%s1] sm:$0xff]
        %v190 = vld [vmem:[%s1 + $0x8] sm:$0x11]
        %s191 = scalar_lea.vmem %s1, 16
        %v192 = vld [vmem:[%s191] sm:$0xff]
        %v193 = vld [vmem:[%s191 + $0x8] sm:$0x11]
        %s194 = scalar_lea.vmem %s1, 32
        %v195 = vld [vmem:[%s194] sm:$0xff]
        %v196 = vld [vmem:[%s194 + $0x8] sm:$0x11]
        %v197 = vld [vmem:[%s2] sm:$0xff]
        %v198 = vld [vmem:[%s2 + $0x8] sm:$0x1]
        %200 = vset.pattern.permute.xlu0 0
        %201 = vperm.xlu0 %200, %v197
        %v202 = vpop.permute.xlu0 %201
        %205 = vset.pattern.permute.xlu0 0
        %206 = vperm.xlu0 %205, %v198
        %v207 = vpop.permute.xlu0 %206
        %v209 = vld [vmem:[%s165] sm:$0xf]
        %v210 = vld [vmem:[%s165 + $0x4] sm:$0xf]
        %v211 = vld [vmem:[%s165 + $0x8] sm:$0xf]
        %v212 = vld [vmem:[%s165 + $0xc] sm:$0xf]
        %v213 = vld [vmem:[%s165 + $0x10] sm:$0xf]
        %v214 = vld [vmem:[%s165 + $0x14] sm:$0xf]
        %v215 = vld [vmem:[%s165 + $0x18] sm:$0xf]
        %v216 = vld [vmem:[%s165 + $0x1c] sm:$0xf]
        %v217 = vld [vmem:[%s165 + $0x20] sm:$0xf]
        %v218 = vld [vmem:[%s165 + $0x24] sm:$0xf]
        %v219 = vld [vmem:[%s165 + $0x28] sm:$0xf]
        %v220 = vld [vmem:[%s165 + $0x2c] sm:$0xf]
        %v221 = vld [vmem:[%s165 + $0x30] sm:$0xf]
        %v222 = vld [vmem:[%s165 + $0x34] sm:$0xf]
        %v223 = vld [vmem:[%s165 + $0x38] sm:$0xf]
        %v224 = vld [vmem:[%s165 + $0x3c] sm:$0xf]
        %v225 = vld [vmem:[%s165 + $0x40] sm:$0xf]
        %v226 = vld [vmem:[%s165 + $0x44] sm:$0xf]
        %v227 = vld [vmem:[%s165 + $0x48] sm:$0xf]
        %v228 = vld [vmem:[%s165 + $0x4c] sm:$0xf]
        %v229 = vld [vmem:[%s165 + $0x50] sm:$0xf]
        %v230 = vld [vmem:[%s165 + $0x54] sm:$0xf]
        %v231 = vld [vmem:[%s165 + $0x58] sm:$0xf]
        %v232 = vld [vmem:[%s165 + $0x5c] sm:$0xf]
        %v235 = vunpack.c.l.b16 %v192
        %v236 = vunpack.c.h.b16 %v192
        %v237 = vunpack.c.l.b16 %v193
        %v238 = vunpack.c.h.b16 %v193
        %v239 = vpack.c.b16 %v237, %v235
        %v240 = vpack.c.b16 %v238, %v236
        %v266 = vunpack.c.l.b16 %v209
        %v267 = vunpack.c.l.b16 %v210
        %v268 = vunpack.c.l.b16 %v211
        %v269 = vunpack.c.l.b16 %v212
        %v270 = vunpack.c.l.b16 %v213
        %v271 = vunpack.c.l.b16 %v214
        %v272 = vunpack.c.l.b16 %v215
        %v273 = vunpack.c.l.b16 %v216
        %v274 = vunpack.c.l.b16 %v217
        %v275 = vunpack.c.l.b16 %v218
        %v276 = vunpack.c.l.b16 %v219
        %v277 = vunpack.c.l.b16 %v220
        %v278 = vunpack.c.l.b16 %v221
        %v279 = vunpack.c.l.b16 %v222
        %v280 = vunpack.c.l.b16 %v223
        %v281 = vunpack.c.l.b16 %v224
        %v282 = vunpack.c.l.b16 %v225
        %v283 = vunpack.c.l.b16 %v226
        %v284 = vunpack.c.l.b16 %v227
        %v285 = vunpack.c.l.b16 %v228
        %v286 = vunpack.c.l.b16 %v229
        %v287 = vunpack.c.l.b16 %v230
        %v288 = vunpack.c.l.b16 %v231
        %v289 = vunpack.c.l.b16 %v232
        %v290 = vpack.c.b16 %v267, %v266
        %v291 = vpack.c.b16 %v269, %v268
        %v292 = vpack.c.b16 %v271, %v270
        %v293 = vpack.c.b16 %v273, %v272
        %v294 = vpack.c.b16 %v275, %v274
        %v295 = vpack.c.b16 %v277, %v276
        %v296 = vpack.c.b16 %v279, %v278
        %v297 = vpack.c.b16 %v281, %v280
        %v298 = vpack.c.b16 %v283, %v282
        %v299 = vpack.c.b16 %v285, %v284
        %v300 = vpack.c.b16 %v287, %v286
        %v301 = vpack.c.b16 %v289, %v288
        %vm314 = vcmask 523264
        %v316 = vsel %vm314, %v240, 0
        %318 = vmatprep.subr.bf16.mxu0 0
        %319 = vmatpush1.bf16.msra.mxu0 %v297
        %320 = vmatprep.subr.bf16.mxu0 0
        %321 = vmatpush1.bf16.msra.mxu0 %v296
        %322 = vmatprep.subr.bf16.mxu0 0
        %323 = vmatpush1.bf16.msra.mxu0 %v295
        %324 = vmatprep.subr.bf16.mxu0 0
        %325 = vmatpush1.bf16.msra.mxu0 %v294
        %326 = vmatprep.subr.bf16.mxu0 0
        %327 = vmatpush1.bf16.msra.mxu0 %v293
        %328 = vmatprep.subr.bf16.mxu0 0
        %329 = vmatpush1.bf16.msra.mxu0 %v292
        %330 = vmatprep.subr.bf16.mxu0 0
        %331 = vmatpush1.bf16.msra.mxu0 %v291
        %332 = vmatprep.subr.bf16.mxu0 0
        %333 = vmatpush1.bf16.msra.mxu0 %v290
        %334 = vmatprep.subr.bf16.mxu0 0
        %335 = vmatpush2.bf16.msra.mxu0 0
        %336 = vmatprep.subr.bf16.mxu0 0
        %337 = vmatpush2.bf16.msra.mxu0 0
        %338 = vmatprep.subr.bf16.mxu0 0
        %339 = vmatpush2.bf16.msra.mxu0 0
        %340 = vmatprep.subr.bf16.mxu0 0
        %341 = vmatpush2.bf16.msra.mxu0 0
        %342 = vmatprep.subr.bf16.mxu0 0
        %343 = vmatpush2.bf16.msra.mxu0 %v301
        %344 = vmatprep.subr.bf16.mxu0 0
        %345 = vmatpush2.bf16.msra.mxu0 %v300
        %346 = vmatprep.subr.bf16.mxu0 0
        %347 = vmatpush2.bf16.msra.mxu0 %v299
        %348 = vmatprep.subr.bf16.mxu0 0
        %349 = vmatpush2.bf16.msra.mxu0 %v298
        %350 = vmatprep.mubr.bf16.mxu0 %v316
        %351 = vmatmul.mubr.bf16.gmra.mxu0 %v239
        %v352 = vpop.f32.mrf.mxu0
        %v353 = vadd.f32 0.0, %v352
        %v354 = vpop.f32.mrf.mxu0
        %v355 = vpop.f32.mrf.mxu0
        %v356 = vadd.f32 0.0, %v355
        %v357 = vpop.f32.mrf.mxu0
        %358 = vdwg.mxu0
        %v361 = vunpack.c.l.b16 %v195
        %v362 = vunpack.c.h.b16 %v195
        %v363 = vunpack.c.l.b16 %v196
        %v364 = vunpack.c.h.b16 %v196
        %v365 = vpack.c.b16 %v363, %v361
        %v366 = vpack.c.b16 %v364, %v362
        %v369 = vsel %vm314, %v366, 0
        %371 = vmatprep.subr.bf16.mxu0 0
        %372 = vmatpush1.bf16.msra.mxu0 %v297
        %373 = vmatprep.subr.bf16.mxu0 0
        %374 = vmatpush1.bf16.msra.mxu0 %v296
        %375 = vmatprep.subr.bf16.mxu0 0
        %376 = vmatpush1.bf16.msra.mxu0 %v295
        %377 = vmatprep.subr.bf16.mxu0 0
        %378 = vmatpush1.bf16.msra.mxu0 %v294
        %379 = vmatprep.subr.bf16.mxu0 0
        %380 = vmatpush1.bf16.msra.mxu0 %v293
        %381 = vmatprep.subr.bf16.mxu0 0
        %382 = vmatpush1.bf16.msra.mxu0 %v292
        %383 = vmatprep.subr.bf16.mxu0 0
        %384 = vmatpush1.bf16.msra.mxu0 %v291
        %385 = vmatprep.subr.bf16.mxu0 0
        %386 = vmatpush1.bf16.msra.mxu0 %v290
        %387 = vmatprep.subr.bf16.mxu0 0
        %388 = vmatpush2.bf16.msra.mxu0 0
        %389 = vmatprep.subr.bf16.mxu0 0
        %390 = vmatpush2.bf16.msra.mxu0 0
        %391 = vmatprep.subr.bf16.mxu0 0
        %392 = vmatpush2.bf16.msra.mxu0 0
        %393 = vmatprep.subr.bf16.mxu0 0
        %394 = vmatpush2.bf16.msra.mxu0 0
        %395 = vmatprep.subr.bf16.mxu0 0
        %396 = vmatpush2.bf16.msra.mxu0 %v301
        %397 = vmatprep.subr.bf16.mxu0 0
        %398 = vmatpush2.bf16.msra.mxu0 %v300
        %399 = vmatprep.subr.bf16.mxu0 0
        %400 = vmatpush2.bf16.msra.mxu0 %v299
        %401 = vmatprep.subr.bf16.mxu0 0
        %402 = vmatpush2.bf16.msra.mxu0 %v298
        %403 = vmatprep.mubr.bf16.mxu0 %v369
        %404 = vmatmul.mubr.bf16.gmra.mxu0 %v365
        %v405 = vpop.f32.mrf.mxu0
        %v406 = vadd.f32 0.0, %v405
        %v407 = vpop.f32.mrf.mxu0
        %v408 = vpop.f32.mrf.mxu0
        %v409 = vadd.f32 0.0, %v408
        %v410 = vpop.f32.mrf.mxu0
        %411 = vdwg.mxu0
        %414 = vrot.lane.b32.xlu0 %v353, 127
        %v415 = vpop.permute.xlu0 %414
        %416 = vrot.lane.b32.xlu0 %v356, 127
        %v417 = vpop.permute.xlu0 %416
        %vm420 = vcmask 1039360
        %v421 = vsel %vm420, %v415, 0.0
        %v422 = vsel %vm420, %v417, 0.0
        %v425 = vunpack.c.l.b16 %v189
        %v426 = vunpack.c.h.b16 %v189
        %v427 = vunpack.c.l.b16 %v190
        %v428 = vunpack.c.h.b16 %v190
        %v429 = vpack.c.b16 %v427, %v425
        %v430 = vpack.c.b16 %v428, %v426
        %v433 = vsel %vm314, %v430, 0
        %435 = vmatprep.subr.bf16.mxu0 0
        %436 = vmatpush1.bf16.msra.mxu0 %v297
        %437 = vmatprep.subr.bf16.mxu0 0
        %438 = vmatpush1.bf16.msra.mxu0 %v296
        %439 = vmatprep.subr.bf16.mxu0 0
        %440 = vmatpush1.bf16.msra.mxu0 %v295
        %441 = vmatprep.subr.bf16.mxu0 0
        %442 = vmatpush1.bf16.msra.mxu0 %v294
        %443 = vmatprep.subr.bf16.mxu0 0
        %444 = vmatpush1.bf16.msra.mxu0 %v293
        %445 = vmatprep.subr.bf16.mxu0 0
        %446 = vmatpush1.bf16.msra.mxu0 %v292
        %447 = vmatprep.subr.bf16.mxu0 0
        %448 = vmatpush1.bf16.msra.mxu0 %v291
        %449 = vmatprep.subr.bf16.mxu0 0
        %450 = vmatpush1.bf16.msra.mxu0 %v290
        %451 = vmatprep.subr.bf16.mxu0 0
        %452 = vmatpush2.bf16.msra.mxu0 0
        %453 = vmatprep.subr.bf16.mxu0 0
        %454 = vmatpush2.bf16.msra.mxu0 0
        %455 = vmatprep.subr.bf16.mxu0 0
        %456 = vmatpush2.bf16.msra.mxu0 0
        %457 = vmatprep.subr.bf16.mxu0 0
        %458 = vmatpush2.bf16.msra.mxu0 0
        %459 = vmatprep.subr.bf16.mxu0 0
        %460 = vmatpush2.bf16.msra.mxu0 %v301
        %461 = vmatprep.subr.bf16.mxu0 0
        %462 = vmatpush2.bf16.msra.mxu0 %v300
        %463 = vmatprep.subr.bf16.mxu0 0
        %464 = vmatpush2.bf16.msra.mxu0 %v299
        %465 = vmatprep.subr.bf16.mxu0 0
        %466 = vmatpush2.bf16.msra.mxu0 %v298
        %467 = vmatprep.mubr.bf16.mxu0 %v433
        %468 = vmatmul.mubr.bf16.gmra.mxu0 %v429
        %v469 = vpop.f32.mrf.mxu0
        %v470 = vadd.f32 %v421, %v469
        %v471 = vpop.f32.mrf.mxu0
        %v472 = vpop.f32.mrf.mxu0
        %v473 = vadd.f32 %v422, %v472
        %v474 = vpop.f32.mrf.mxu0
        %475 = vdwg.mxu0
        %478 = vrot.lane.b32.xlu0 %v406, 126
        %v479 = vpop.permute.xlu0 %478
        %480 = vrot.lane.b32.xlu0 %v409, 126
        %v481 = vpop.permute.xlu0 %480
        %vm484 = vcmask 1031168
        %v485 = vsel %vm484, %v479, 0.0
        %v486 = vsel %vm484, %v481, 0.0
        %v487 = vadd.f32 %v470, %v485
        %v488 = vadd.f32 %v473, %v486
        %v489 = vadd.f32 %v487, %v202
        %v490 = vadd.f32 %v488, %v207
        %v491 = vmax.f32 %v489, 0.0
        %v492 = vmax.f32 %v490, 0.0
        %v493 = vadd.f32 %v491, 0.0
        %v494 = vadd.f32 %v492, 0.0
        %v495 = vld [vmem:[%s165 + $0x20] sm:$0xf]
        %v496 = vld [vmem:[%s165 + $0x24] sm:$0xf]
        %v497 = vld [vmem:[%s165 + $0x28] sm:$0xf]
        %v498 = vld [vmem:[%s165 + $0x2c] sm:$0xf]
        %v499 = vld [vmem:[%s165 + $0x30] sm:$0xf]
        %v500 = vld [vmem:[%s165 + $0x34] sm:$0xf]
        %v501 = vld [vmem:[%s165 + $0x38] sm:$0xf]
        %v502 = vld [vmem:[%s165 + $0x3c] sm:$0xf]
        %v503 = vld [vmem:[%s165 + $0x40] sm:$0xf]
        %v504 = vld [vmem:[%s165 + $0x44] sm:$0xf]
        %v505 = vld [vmem:[%s165 + $0x48] sm:$0xf]
        %v506 = vld [vmem:[%s165 + $0x4c] sm:$0xf]
        %v507 = vld [vmem:[%s165 + $0x50] sm:$0xf]
        %v508 = vld [vmem:[%s165 + $0x54] sm:$0xf]
        %v509 = vld [vmem:[%s165 + $0x58] sm:$0xf]
        %v510 = vld [vmem:[%s165 + $0x5c] sm:$0xf]
        %v511 = vld [vmem:[%s165 + $0x60] sm:$0xf]
        %v512 = vld [vmem:[%s165 + $0x64] sm:$0xf]
        %v513 = vld [vmem:[%s165 + $0x68] sm:$0xf]
        %v514 = vld [vmem:[%s165 + $0x6c] sm:$0xf]
        %v515 = vld [vmem:[%s165 + $0x70] sm:$0xf]
        %v516 = vld [vmem:[%s165 + $0x74] sm:$0xf]
        %v517 = vld [vmem:[%s165 + $0x78] sm:$0xf]
        %v518 = vld [vmem:[%s165 + $0x7c] sm:$0xf]
        %v543 = vunpack.c.l.b16 %v495
        %v544 = vunpack.c.l.b16 %v496
        %v545 = vunpack.c.l.b16 %v497
        %v546 = vunpack.c.l.b16 %v498
        %v547 = vunpack.c.l.b16 %v499
        %v548 = vunpack.c.l.b16 %v500
        %v549 = vunpack.c.l.b16 %v501
        %v550 = vunpack.c.l.b16 %v502
        %v551 = vunpack.c.l.b16 %v503
        %v552 = vunpack.c.l.b16 %v504
        %v553 = vunpack.c.l.b16 %v505
        %v554 = vunpack.c.l.b16 %v506
        %v555 = vunpack.c.l.b16 %v507
        %v556 = vunpack.c.l.b16 %v508
        %v557 = vunpack.c.l.b16 %v509
        %v558 = vunpack.c.l.b16 %v510
        %v559 = vunpack.c.l.b16 %v511
        %v560 = vunpack.c.l.b16 %v512
        %v561 = vunpack.c.l.b16 %v513
        %v562 = vunpack.c.l.b16 %v514
        %v563 = vunpack.c.l.b16 %v515
        %v564 = vunpack.c.l.b16 %v516
        %v565 = vunpack.c.l.b16 %v517
        %v566 = vunpack.c.l.b16 %v518
        %v567 = vpack.c.b16 %v544, %v543
        %v568 = vpack.c.b16 %v546, %v545
        %v569 = vpack.c.b16 %v548, %v547
        %v570 = vpack.c.b16 %v550, %v549
        %v571 = vpack.c.b16 %v552, %v551
        %v572 = vpack.c.b16 %v554, %v553
        %v573 = vpack.c.b16 %v556, %v555
        %v574 = vpack.c.b16 %v558, %v557
        %v575 = vpack.c.b16 %v560, %v559
        %v576 = vpack.c.b16 %v562, %v561
        %v577 = vpack.c.b16 %v564, %v563
        %v578 = vpack.c.b16 %v566, %v565
        %591 = vmatprep.subr.bf16.mxu0 0
        %592 = vmatpush1.bf16.msra.mxu0 %v574
        %593 = vmatprep.subr.bf16.mxu0 0
        %594 = vmatpush1.bf16.msra.mxu0 %v573
        %595 = vmatprep.subr.bf16.mxu0 0
        %596 = vmatpush1.bf16.msra.mxu0 %v572
        %597 = vmatprep.subr.bf16.mxu0 0
        %598 = vmatpush1.bf16.msra.mxu0 %v571
        %599 = vmatprep.subr.bf16.mxu0 0
        %600 = vmatpush1.bf16.msra.mxu0 %v570
        %601 = vmatprep.subr.bf16.mxu0 0
        %602 = vmatpush1.bf16.msra.mxu0 %v569
        %603 = vmatprep.subr.bf16.mxu0 0
        %604 = vmatpush1.bf16.msra.mxu0 %v568
        %605 = vmatprep.subr.bf16.mxu0 0
        %606 = vmatpush1.bf16.msra.mxu0 %v567
        %607 = vmatprep.subr.bf16.mxu0 0
        %608 = vmatpush2.bf16.msra.mxu0 0
        %609 = vmatprep.subr.bf16.mxu0 0
        %610 = vmatpush2.bf16.msra.mxu0 0
        %611 = vmatprep.subr.bf16.mxu0 0
        %612 = vmatpush2.bf16.msra.mxu0 0
        %613 = vmatprep.subr.bf16.mxu0 0
        %614 = vmatpush2.bf16.msra.mxu0 0
        %615 = vmatprep.subr.bf16.mxu0 0
        %616 = vmatpush2.bf16.msra.mxu0 %v578
        %617 = vmatprep.subr.bf16.mxu0 0
        %618 = vmatpush2.bf16.msra.mxu0 %v577
        %619 = vmatprep.subr.bf16.mxu0 0
        %620 = vmatpush2.bf16.msra.mxu0 %v576
        %621 = vmatprep.subr.bf16.mxu0 0
        %622 = vmatpush2.bf16.msra.mxu0 %v575
        %623 = vmatprep.mubr.bf16.mxu0 %v316
        %624 = vmatmul.mubr.bf16.gmra.mxu0 %v239
        %v625 = vpop.f32.mrf.mxu0
        %v626 = vadd.f32 0.0, %v625
        %v627 = vpop.f32.mrf.mxu0
        %v628 = vpop.f32.mrf.mxu0
        %v629 = vadd.f32 0.0, %v628
        %v630 = vpop.f32.mrf.mxu0
        %631 = vdwg.mxu0
        %632 = vmatprep.subr.bf16.mxu0 0
        %633 = vmatpush1.bf16.msra.mxu0 %v574
        %634 = vmatprep.subr.bf16.mxu0 0
        %635 = vmatpush1.bf16.msra.mxu0 %v573
        %636 = vmatprep.subr.bf16.mxu0 0
        %637 = vmatpush1.bf16.msra.mxu0 %v572
        %638 = vmatprep.subr.bf16.mxu0 0
        %639 = vmatpush1.bf16.msra.mxu0 %v571
        %640 = vmatprep.subr.bf16.mxu0 0
        %641 = vmatpush1.bf16.msra.mxu0 %v570
        %642 = vmatprep.subr.bf16.mxu0 0
        %643 = vmatpush1.bf16.msra.mxu0 %v569
        %644 = vmatprep.subr.bf16.mxu0 0
        %645 = vmatpush1.bf16.msra.mxu0 %v568
        %646 = vmatprep.subr.bf16.mxu0 0
        %647 = vmatpush1.bf16.msra.mxu0 %v567
        %648 = vmatprep.subr.bf16.mxu0 0
        %649 = vmatpush2.bf16.msra.mxu0 0
        %650 = vmatprep.subr.bf16.mxu0 0
        %651 = vmatpush2.bf16.msra.mxu0 0
        %652 = vmatprep.subr.bf16.mxu0 0
        %653 = vmatpush2.bf16.msra.mxu0 0
        %654 = vmatprep.subr.bf16.mxu0 0
        %655 = vmatpush2.bf16.msra.mxu0 0
        %656 = vmatprep.subr.bf16.mxu0 0
        %657 = vmatpush2.bf16.msra.mxu0 %v578
        %658 = vmatprep.subr.bf16.mxu0 0
        %659 = vmatpush2.bf16.msra.mxu0 %v577
        %660 = vmatprep.subr.bf16.mxu0 0
        %661 = vmatpush2.bf16.msra.mxu0 %v576
        %662 = vmatprep.subr.bf16.mxu0 0
        %663 = vmatpush2.bf16.msra.mxu0 %v575
        %664 = vmatprep.mubr.bf16.mxu0 %v369
        %665 = vmatmul.mubr.bf16.gmra.mxu0 %v365
        %v666 = vpop.f32.mrf.mxu0
        %v667 = vadd.f32 0.0, %v666
        %v668 = vpop.f32.mrf.mxu0
        %v669 = vpop.f32.mrf.mxu0
        %v670 = vadd.f32 0.0, %v669
        %v671 = vpop.f32.mrf.mxu0
        %672 = vdwg.mxu0
        %675 = vrot.lane.b32.xlu0 %v626, 127
        %v676 = vpop.permute.xlu0 %675
        %677 = vrot.lane.b32.xlu0 %v629, 127
        %v678 = vpop.permute.xlu0 %677
        %v681 = vsel %vm420, %v676, 0.0
        %v682 = vsel %vm420, %v678, 0.0
        %683 = vmatprep.subr.bf16.mxu0 0
        %684 = vmatpush1.bf16.msra.mxu0 %v574
        %685 = vmatprep.subr.bf16.mxu0 0
        %686 = vmatpush1.bf16.msra.mxu0 %v573
        %687 = vmatprep.subr.bf16.mxu0 0
        %688 = vmatpush1.bf16.msra.mxu0 %v572
        %689 = vmatprep.subr.bf16.mxu0 0
        %690 = vmatpush1.bf16.msra.mxu0 %v571
        %691 = vmatprep.subr.bf16.mxu0 0
        %692 = vmatpush1.bf16.msra.mxu0 %v570
        %693 = vmatprep.subr.bf16.mxu0 0
        %694 = vmatpush1.bf16.msra.mxu0 %v569
        %695 = vmatprep.subr.bf16.mxu0 0
        %696 = vmatpush1.bf16.msra.mxu0 %v568
        %697 = vmatprep.subr.bf16.mxu0 0
        %698 = vmatpush1.bf16.msra.mxu0 %v567
        %699 = vmatprep.subr.bf16.mxu0 0
        %700 = vmatpush2.bf16.msra.mxu0 0
        %701 = vmatprep.subr.bf16.mxu0 0
        %702 = vmatpush2.bf16.msra.mxu0 0
        %703 = vmatprep.subr.bf16.mxu0 0
        %704 = vmatpush2.bf16.msra.mxu0 0
        %705 = vmatprep.subr.bf16.mxu0 0
        %706 = vmatpush2.bf16.msra.mxu0 0
        %707 = vmatprep.subr.bf16.mxu0 0
        %708 = vmatpush2.bf16.msra.mxu0 %v578
        %709 = vmatprep.subr.bf16.mxu0 0
        %710 = vmatpush2.bf16.msra.mxu0 %v577
        %711 = vmatprep.subr.bf16.mxu0 0
        %712 = vmatpush2.bf16.msra.mxu0 %v576
        %713 = vmatprep.subr.bf16.mxu0 0
        %714 = vmatpush2.bf16.msra.mxu0 %v575
        %715 = vmatprep.mubr.bf16.mxu0 %v433
        %716 = vmatmul.mubr.bf16.gmra.mxu0 %v429
        %v717 = vpop.f32.mrf.mxu0
        %v718 = vadd.f32 %v681, %v717
        %v719 = vpop.f32.mrf.mxu0
        %v720 = vpop.f32.mrf.mxu0
        %v721 = vadd.f32 %v682, %v720
        %v722 = vpop.f32.mrf.mxu0
        %723 = vdwg.mxu0
        %726 = vrot.lane.b32.xlu0 %v667, 126
        %v727 = vpop.permute.xlu0 %726
        %728 = vrot.lane.b32.xlu0 %v670, 126
        %v729 = vpop.permute.xlu0 %728
        %v732 = vsel %vm484, %v727, 0.0
        %v733 = vsel %vm484, %v729, 0.0
        %v734 = vadd.f32 %v718, %v732
        %v735 = vadd.f32 %v721, %v733
        %v736 = vadd.f32 %v734, %v202
        %v737 = vadd.f32 %v735, %v207
        %v738 = vmax.f32 %v736, 0.0
        %v739 = vmax.f32 %v737, 0.0
        %v740 = vadd.f32 %v493, %v738
        %v741 = vadd.f32 %v494, %v739
        %v742 = vld [vmem:[%s165 + $0x40] sm:$0xf]
        %v743 = vld [vmem:[%s165 + $0x44] sm:$0xf]
        %v744 = vld [vmem:[%s165 + $0x48] sm:$0xf]
        %v745 = vld [vmem:[%s165 + $0x4c] sm:$0xf]
        %v746 = vld [vmem:[%s165 + $0x50] sm:$0xf]
        %v747 = vld [vmem:[%s165 + $0x54] sm:$0xf]
        %v748 = vld [vmem:[%s165 + $0x58] sm:$0xf]
        %v749 = vld [vmem:[%s165 + $0x5c] sm:$0xf]
        %v750 = vld [vmem:[%s165 + $0x60] sm:$0xf]
        %v751 = vld [vmem:[%s165 + $0x64] sm:$0xf]
        %v752 = vld [vmem:[%s165 + $0x68] sm:$0xf]
        %v753 = vld [vmem:[%s165 + $0x6c] sm:$0xf]
        %v754 = vld [vmem:[%s165 + $0x70] sm:$0xf]
        %v755 = vld [vmem:[%s165 + $0x74] sm:$0xf]
        %v756 = vld [vmem:[%s165 + $0x78] sm:$0xf]
        %v757 = vld [vmem:[%s165 + $0x7c] sm:$0xf]
        %v758 = vld [vmem:[%s165 + $0x80] sm:$0xf]
        %v759 = vld [vmem:[%s165 + $0x84] sm:$0xf]
        %v760 = vld [vmem:[%s165 + $0x88] sm:$0xf]
        %v761 = vld [vmem:[%s165 + $0x8c] sm:$0xf]
        %v762 = vld [vmem:[%s165 + $0x90] sm:$0xf]
        %v763 = vld [vmem:[%s165 + $0x94] sm:$0xf]
        %v764 = vld [vmem:[%s165 + $0x98] sm:$0xf]
        %v765 = vld [vmem:[%s165 + $0x9c] sm:$0xf]
        %v790 = vunpack.c.l.b16 %v742
        %v791 = vunpack.c.l.b16 %v743
        %v792 = vunpack.c.l.b16 %v744
        %v793 = vunpack.c.l.b16 %v745
        %v794 = vunpack.c.l.b16 %v746
        %v795 = vunpack.c.l.b16 %v747
        %v796 = vunpack.c.l.b16 %v748
        %v797 = vunpack.c.l.b16 %v749
        %v798 = vunpack.c.l.b16 %v750
        %v799 = vunpack.c.l.b16 %v751
        %v800 = vunpack.c.l.b16 %v752
        %v801 = vunpack.c.l.b16 %v753
        %v802 = vunpack.c.l.b16 %v754
        %v803 = vunpack.c.l.b16 %v755
        %v804 = vunpack.c.l.b16 %v756
        %v805 = vunpack.c.l.b16 %v757
        %v806 = vunpack.c.l.b16 %v758
        %v807 = vunpack.c.l.b16 %v759
        %v808 = vunpack.c.l.b16 %v760
        %v809 = vunpack.c.l.b16 %v761
        %v810 = vunpack.c.l.b16 %v762
        %v811 = vunpack.c.l.b16 %v763
        %v812 = vunpack.c.l.b16 %v764
        %v813 = vunpack.c.l.b16 %v765
        %v814 = vpack.c.b16 %v791, %v790
        %v815 = vpack.c.b16 %v793, %v792
        %v816 = vpack.c.b16 %v795, %v794
        %v817 = vpack.c.b16 %v797, %v796
        %v818 = vpack.c.b16 %v799, %v798
        %v819 = vpack.c.b16 %v801, %v800
        %v820 = vpack.c.b16 %v803, %v802
        %v821 = vpack.c.b16 %v805, %v804
        %v822 = vpack.c.b16 %v807, %v806
        %v823 = vpack.c.b16 %v809, %v808
        %v824 = vpack.c.b16 %v811, %v810
        %v825 = vpack.c.b16 %v813, %v812
        %838 = vmatprep.subr.bf16.mxu0 0
        %839 = vmatpush1.bf16.msra.mxu0 %v821
        %840 = vmatprep.subr.bf16.mxu0 0
        %841 = vmatpush1.bf16.msra.mxu0 %v820
        %842 = vmatprep.subr.bf16.mxu0 0
        %843 = vmatpush1.bf16.msra.mxu0 %v819
        %844 = vmatprep.subr.bf16.mxu0 0
        %845 = vmatpush1.bf16.msra.mxu0 %v818
        %846 = vmatprep.subr.bf16.mxu0 0
        %847 = vmatpush1.bf16.msra.mxu0 %v817
        %848 = vmatprep.subr.bf16.mxu0 0
        %849 = vmatpush1.bf16.msra.mxu0 %v816
        %850 = vmatprep.subr.bf16.mxu0 0
        %851 = vmatpush1.bf16.msra.mxu0 %v815
        %852 = vmatprep.subr.bf16.mxu0 0
        %853 = vmatpush1.bf16.msra.mxu0 %v814
        %854 = vmatprep.subr.bf16.mxu0 0
        %855 = vmatpush2.bf16.msra.mxu0 0
        %856 = vmatprep.subr.bf16.mxu0 0
        %857 = vmatpush2.bf16.msra.mxu0 0
        %858 = vmatprep.subr.bf16.mxu0 0
        %859 = vmatpush2.bf16.msra.mxu0 0
        %860 = vmatprep.subr.bf16.mxu0 0
        %861 = vmatpush2.bf16.msra.mxu0 0
        %862 = vmatprep.subr.bf16.mxu0 0
        %863 = vmatpush2.bf16.msra.mxu0 %v825
        %864 = vmatprep.subr.bf16.mxu0 0
        %865 = vmatpush2.bf16.msra.mxu0 %v824
        %866 = vmatprep.subr.bf16.mxu0 0
        %867 = vmatpush2.bf16.msra.mxu0 %v823
        %868 = vmatprep.subr.bf16.mxu0 0
        %869 = vmatpush2.bf16.msra.mxu0 %v822
        %870 = vmatprep.mubr.bf16.mxu0 %v316
        %871 = vmatmul.mubr.bf16.gmra.mxu0 %v239
        %v872 = vpop.f32.mrf.mxu0
        %v873 = vadd.f32 0.0, %v872
        %v874 = vpop.f32.mrf.mxu0
        %v875 = vpop.f32.mrf.mxu0
        %v876 = vadd.f32 0.0, %v875
        %v877 = vpop.f32.mrf.mxu0
        %878 = vdwg.mxu0
        %879 = vmatprep.subr.bf16.mxu0 0
        %880 = vmatpush1.bf16.msra.mxu0 %v821
        %881 = vmatprep.subr.bf16.mxu0 0
        %882 = vmatpush1.bf16.msra.mxu0 %v820
        %883 = vmatprep.subr.bf16.mxu0 0
        %884 = vmatpush1.bf16.msra.mxu0 %v819
        %885 = vmatprep.subr.bf16.mxu0 0
        %886 = vmatpush1.bf16.msra.mxu0 %v818
        %887 = vmatprep.subr.bf16.mxu0 0
        %888 = vmatpush1.bf16.msra.mxu0 %v817
        %889 = vmatprep.subr.bf16.mxu0 0
        %890 = vmatpush1.bf16.msra.mxu0 %v816
        %891 = vmatprep.subr.bf16.mxu0 0
        %892 = vmatpush1.bf16.msra.mxu0 %v815
        %893 = vmatprep.subr.bf16.mxu0 0
        %894 = vmatpush1.bf16.msra.mxu0 %v814
        %895 = vmatprep.subr.bf16.mxu0 0
        %896 = vmatpush2.bf16.msra.mxu0 0
        %897 = vmatprep.subr.bf16.mxu0 0
        %898 = vmatpush2.bf16.msra.mxu0 0
        %899 = vmatprep.subr.bf16.mxu0 0
        %900 = vmatpush2.bf16.msra.mxu0 0
        %901 = vmatprep.subr.bf16.mxu0 0
        %902 = vmatpush2.bf16.msra.mxu0 0
        %903 = vmatprep.subr.bf16.mxu0 0
        %904 = vmatpush2.bf16.msra.mxu0 %v825
        %905 = vmatprep.subr.bf16.mxu0 0
        %906 = vmatpush2.bf16.msra.mxu0 %v824
        %907 = vmatprep.subr.bf16.mxu0 0
        %908 = vmatpush2.bf16.msra.mxu0 %v823
        %909 = vmatprep.subr.bf16.mxu0 0
        %910 = vmatpush2.bf16.msra.mxu0 %v822
        %911 = vmatprep.mubr.bf16.mxu0 %v369
        %912 = vmatmul.mubr.bf16.gmra.mxu0 %v365
        %v913 = vpop.f32.mrf.mxu0
        %v914 = vadd.f32 0.0, %v913
        %v915 = vpop.f32.mrf.mxu0
        %v916 = vpop.f32.mrf.mxu0
        %v917 = vadd.f32 0.0, %v916
        %v918 = vpop.f32.mrf.mxu0
        %919 = vdwg.mxu0
        %922 = vrot.lane.b32.xlu0 %v873, 127
        %v923 = vpop.permute.xlu0 %922
        %924 = vrot.lane.b32.xlu0 %v876, 127
        %v925 = vpop.permute.xlu0 %924
        %v928 = vsel %vm420, %v923, 0.0
        %v929 = vsel %vm420, %v925, 0.0
        %930 = vmatprep.subr.bf16.mxu0 0
        %931 = vmatpush1.bf16.msra.mxu0 %v821
        %932 = vmatprep.subr.bf16.mxu0 0
        %933 = vmatpush1.bf16.msra.mxu0 %v820
        %934 = vmatprep.subr.bf16.mxu0 0
        %935 = vmatpush1.bf16.msra.mxu0 %v819
        %936 = vmatprep.subr.bf16.mxu0 0
        %937 = vmatpush1.bf16.msra.mxu0 %v818
        %938 = vmatprep.subr.bf16.mxu0 0
        %939 = vmatpush1.bf16.msra.mxu0 %v817
        %940 = vmatprep.subr.bf16.mxu0 0
        %941 = vmatpush1.bf16.msra.mxu0 %v816
        %942 = vmatprep.subr.bf16.mxu0 0
        %943 = vmatpush1.bf16.msra.mxu0 %v815
        %944 = vmatprep.subr.bf16.mxu0 0
        %945 = vmatpush1.bf16.msra.mxu0 %v814
        %946 = vmatprep.subr.bf16.mxu0 0
        %947 = vmatpush2.bf16.msra.mxu0 0
        %948 = vmatprep.subr.bf16.mxu0 0
        %949 = vmatpush2.bf16.msra.mxu0 0
        %950 = vmatprep.subr.bf16.mxu0 0
        %951 = vmatpush2.bf16.msra.mxu0 0
        %952 = vmatprep.subr.bf16.mxu0 0
        %953 = vmatpush2.bf16.msra.mxu0 0
        %954 = vmatprep.subr.bf16.mxu0 0
        %955 = vmatpush2.bf16.msra.mxu0 %v825
        %956 = vmatprep.subr.bf16.mxu0 0
        %957 = vmatpush2.bf16.msra.mxu0 %v824
        %958 = vmatprep.subr.bf16.mxu0 0
        %959 = vmatpush2.bf16.msra.mxu0 %v823
        %960 = vmatprep.subr.bf16.mxu0 0
        %961 = vmatpush2.bf16.msra.mxu0 %v822
        %962 = vmatprep.mubr.bf16.mxu0 %v433
        %963 = vmatmul.mubr.bf16.gmra.mxu0 %v429
        %v964 = vpop.f32.mrf.mxu0
        %v965 = vadd.f32 %v928, %v964
        %v966 = vpop.f32.mrf.mxu0
        %v967 = vpop.f32.mrf.mxu0
        %v968 = vadd.f32 %v929, %v967
        %v969 = vpop.f32.mrf.mxu0
        %970 = vdwg.mxu0
        %973 = vrot.lane.b32.xlu0 %v914, 126
        %v974 = vpop.permute.xlu0 %973
        %975 = vrot.lane.b32.xlu0 %v917, 126
        %v976 = vpop.permute.xlu0 %975
        %v979 = vsel %vm484, %v974, 0.0
        %v980 = vsel %vm484, %v976, 0.0
        %v981 = vadd.f32 %v965, %v979
        %v982 = vadd.f32 %v968, %v980
        %v983 = vadd.f32 %v981, %v202
        %v984 = vadd.f32 %v982, %v207
        %v985 = vmax.f32 %v983, 0.0
        %v986 = vmax.f32 %v984, 0.0
        %v987 = vadd.f32 %v740, %v985
        %v988 = vadd.f32 %v741, %v986
        %v989 = vld [vmem:[%s165 + $0x60] sm:$0xf]
        %v990 = vld [vmem:[%s165 + $0x64] sm:$0xf]
        %v991 = vld [vmem:[%s165 + $0x68] sm:$0xf]
        %v992 = vld [vmem:[%s165 + $0x6c] sm:$0xf]
        %v993 = vld [vmem:[%s165 + $0x70] sm:$0xf]
        %v994 = vld [vmem:[%s165 + $0x74] sm:$0xf]
        %v995 = vld [vmem:[%s165 + $0x78] sm:$0xf]
        %v996 = vld [vmem:[%s165 + $0x7c] sm:$0xf]
        %v997 = vld [vmem:[%s165 + $0x80] sm:$0xf]
        %v998 = vld [vmem:[%s165 + $0x84] sm:$0xf]
        %v999 = vld [vmem:[%s165 + $0x88] sm:$0xf]
        %v1000 = vld [vmem:[%s165 + $0x8c] sm:$0xf]
        %v1001 = vld [vmem:[%s165 + $0x90] sm:$0xf]
        %v1002 = vld [vmem:[%s165 + $0x94] sm:$0xf]
        %v1003 = vld [vmem:[%s165 + $0x98] sm:$0xf]
        %v1004 = vld [vmem:[%s165 + $0x9c] sm:$0xf]
        %v1005 = vld [vmem:[%s165 + $0xa0] sm:$0xf]
        %v1006 = vld [vmem:[%s165 + $0xa4] sm:$0xf]
        %v1007 = vld [vmem:[%s165 + $0xa8] sm:$0xf]
        %v1008 = vld [vmem:[%s165 + $0xac] sm:$0xf]
        %v1009 = vld [vmem:[%s165 + $0xb0] sm:$0xf]
        %v1010 = vld [vmem:[%s165 + $0xb4] sm:$0xf]
        %v1011 = vld [vmem:[%s165 + $0xb8] sm:$0xf]
        %v1012 = vld [vmem:[%s165 + $0xbc] sm:$0xf]
        %v1037 = vunpack.c.l.b16 %v989
        %v1038 = vunpack.c.l.b16 %v990
        %v1039 = vunpack.c.l.b16 %v991
        %v1040 = vunpack.c.l.b16 %v992
        %v1041 = vunpack.c.l.b16 %v993
        %v1042 = vunpack.c.l.b16 %v994
        %v1043 = vunpack.c.l.b16 %v995
        %v1044 = vunpack.c.l.b16 %v996
        %v1045 = vunpack.c.l.b16 %v997
        %v1046 = vunpack.c.l.b16 %v998
        %v1047 = vunpack.c.l.b16 %v999
        %v1048 = vunpack.c.l.b16 %v1000
        %v1049 = vunpack.c.l.b16 %v1001
        %v1050 = vunpack.c.l.b16 %v1002
        %v1051 = vunpack.c.l.b16 %v1003
        %v1052 = vunpack.c.l.b16 %v1004
        %v1053 = vunpack.c.l.b16 %v1005
        %v1054 = vunpack.c.l.b16 %v1006
        %v1055 = vunpack.c.l.b16 %v1007
        %v1056 = vunpack.c.l.b16 %v1008
        %v1057 = vunpack.c.l.b16 %v1009
        %v1058 = vunpack.c.l.b16 %v1010
        %v1059 = vunpack.c.l.b16 %v1011
        %v1060 = vunpack.c.l.b16 %v1012
        %v1061 = vpack.c.b16 %v1038, %v1037
        %v1062 = vpack.c.b16 %v1040, %v1039
        %v1063 = vpack.c.b16 %v1042, %v1041
        %v1064 = vpack.c.b16 %v1044, %v1043
        %v1065 = vpack.c.b16 %v1046, %v1045
        %v1066 = vpack.c.b16 %v1048, %v1047
        %v1067 = vpack.c.b16 %v1050, %v1049
        %v1068 = vpack.c.b16 %v1052, %v1051
        %v1069 = vpack.c.b16 %v1054, %v1053
        %v1070 = vpack.c.b16 %v1056, %v1055
        %v1071 = vpack.c.b16 %v1058, %v1057
        %v1072 = vpack.c.b16 %v1060, %v1059
        %1085 = vmatprep.subr.bf16.mxu0 0
        %1086 = vmatpush1.bf16.msra.mxu0 %v1068
        %1087 = vmatprep.subr.bf16.mxu0 0
        %1088 = vmatpush1.bf16.msra.mxu0 %v1067
        %1089 = vmatprep.subr.bf16.mxu0 0
        %1090 = vmatpush1.bf16.msra.mxu0 %v1066
        %1091 = vmatprep.subr.bf16.mxu0 0
        %1092 = vmatpush1.bf16.msra.mxu0 %v1065
        %1093 = vmatprep.subr.bf16.mxu0 0
        %1094 = vmatpush1.bf16.msra.mxu0 %v1064
        %1095 = vmatprep.subr.bf16.mxu0 0
        %1096 = vmatpush1.bf16.msra.mxu0 %v1063
        %1097 = vmatprep.subr.bf16.mxu0 0
        %1098 = vmatpush1.bf16.msra.mxu0 %v1062
        %1099 = vmatprep.subr.bf16.mxu0 0
        %1100 = vmatpush1.bf16.msra.mxu0 %v1061
        %1101 = vmatprep.subr.bf16.mxu0 0
        %1102 = vmatpush2.bf16.msra.mxu0 0
        %1103 = vmatprep.subr.bf16.mxu0 0
        %1104 = vmatpush2.bf16.msra.mxu0 0
        %1105 = vmatprep.subr.bf16.mxu0 0
        %1106 = vmatpush2.bf16.msra.mxu0 0
        %1107 = vmatprep.subr.bf16.mxu0 0
        %1108 = vmatpush2.bf16.msra.mxu0 0
        %1109 = vmatprep.subr.bf16.mxu0 0
        %1110 = vmatpush2.bf16.msra.mxu0 %v1072
        %1111 = vmatprep.subr.bf16.mxu0 0
        %1112 = vmatpush2.bf16.msra.mxu0 %v1071
        %1113 = vmatprep.subr.bf16.mxu0 0
        %1114 = vmatpush2.bf16.msra.mxu0 %v1070
        %1115 = vmatprep.subr.bf16.mxu0 0
        %1116 = vmatpush2.bf16.msra.mxu0 %v1069
        %1117 = vmatprep.mubr.bf16.mxu0 %v316
        %1118 = vmatmul.mubr.bf16.gmra.mxu0 %v239
        %v1119 = vpop.f32.mrf.mxu0
        %v1120 = vadd.f32 0.0, %v1119
        %v1121 = vpop.f32.mrf.mxu0
        %v1122 = vpop.f32.mrf.mxu0
        %v1123 = vadd.f32 0.0, %v1122
        %v1124 = vpop.f32.mrf.mxu0
        %1125 = vdwg.mxu0
        %1126 = vmatprep.subr.bf16.mxu0 0
        %1127 = vmatpush1.bf16.msra.mxu0 %v1068
        %1128 = vmatprep.subr.bf16.mxu0 0
        %1129 = vmatpush1.bf16.msra.mxu0 %v1067
        %1130 = vmatprep.subr.bf16.mxu0 0
        %1131 = vmatpush1.bf16.msra.mxu0 %v1066
        %1132 = vmatprep.subr.bf16.mxu0 0
        %1133 = vmatpush1.bf16.msra.mxu0 %v1065
        %1134 = vmatprep.subr.bf16.mxu0 0
        %1135 = vmatpush1.bf16.msra.mxu0 %v1064
        %1136 = vmatprep.subr.bf16.mxu0 0
        %1137 = vmatpush1.bf16.msra.mxu0 %v1063
        %1138 = vmatprep.subr.bf16.mxu0 0
        %1139 = vmatpush1.bf16.msra.mxu0 %v1062
        %1140 = vmatprep.subr.bf16.mxu0 0
        %1141 = vmatpush1.bf16.msra.mxu0 %v1061
        %1142 = vmatprep.subr.bf16.mxu0 0
        %1143 = vmatpush2.bf16.msra.mxu0 0
        %1144 = vmatprep.subr.bf16.mxu0 0
        %1145 = vmatpush2.bf16.msra.mxu0 0
        %1146 = vmatprep.subr.bf16.mxu0 0
        %1147 = vmatpush2.bf16.msra.mxu0 0
        %1148 = vmatprep.subr.bf16.mxu0 0
        %1149 = vmatpush2.bf16.msra.mxu0 0
        %1150 = vmatprep.subr.bf16.mxu0 0
        %1151 = vmatpush2.bf16.msra.mxu0 %v1072
        %1152 = vmatprep.subr.bf16.mxu0 0
        %1153 = vmatpush2.bf16.msra.mxu0 %v1071
        %1154 = vmatprep.subr.bf16.mxu0 0
        %1155 = vmatpush2.bf16.msra.mxu0 %v1070
        %1156 = vmatprep.subr.bf16.mxu0 0
        %1157 = vmatpush2.bf16.msra.mxu0 %v1069
        %1158 = vmatprep.mubr.bf16.mxu0 %v369
        %1159 = vmatmul.mubr.bf16.gmra.mxu0 %v365
        %v1160 = vpop.f32.mrf.mxu0
        %v1161 = vadd.f32 0.0, %v1160
        %v1162 = vpop.f32.mrf.mxu0
        %v1163 = vpop.f32.mrf.mxu0
        %v1164 = vadd.f32 0.0, %v1163
        %v1165 = vpop.f32.mrf.mxu0
        %1166 = vdwg.mxu0
        %1169 = vrot.lane.b32.xlu0 %v1120, 127
        %v1170 = vpop.permute.xlu0 %1169
        %1171 = vrot.lane.b32.xlu0 %v1123, 127
        %v1172 = vpop.permute.xlu0 %1171
        %v1175 = vsel %vm420, %v1170, 0.0
        %v1176 = vsel %vm420, %v1172, 0.0
        %1177 = vmatprep.subr.bf16.mxu0 0
        %1178 = vmatpush1.bf16.msra.mxu0 %v1068
        %1179 = vmatprep.subr.bf16.mxu0 0
        %1180 = vmatpush1.bf16.msra.mxu0 %v1067
        %1181 = vmatprep.subr.bf16.mxu0 0
        %1182 = vmatpush1.bf16.msra.mxu0 %v1066
        %1183 = vmatprep.subr.bf16.mxu0 0
        %1184 = vmatpush1.bf16.msra.mxu0 %v1065
        %1185 = vmatprep.subr.bf16.mxu0 0
        %1186 = vmatpush1.bf16.msra.mxu0 %v1064
        %1187 = vmatprep.subr.bf16.mxu0 0
        %1188 = vmatpush1.bf16.msra.mxu0 %v1063
        %1189 = vmatprep.subr.bf16.mxu0 0
        %1190 = vmatpush1.bf16.msra.mxu0 %v1062
        %1191 = vmatprep.subr.bf16.mxu0 0
        %1192 = vmatpush1.bf16.msra.mxu0 %v1061
        %1193 = vmatprep.subr.bf16.mxu0 0
        %1194 = vmatpush2.bf16.msra.mxu0 0
        %1195 = vmatprep.subr.bf16.mxu0 0
        %1196 = vmatpush2.bf16.msra.mxu0 0
        %1197 = vmatprep.subr.bf16.mxu0 0
        %1198 = vmatpush2.bf16.msra.mxu0 0
        %1199 = vmatprep.subr.bf16.mxu0 0
        %1200 = vmatpush2.bf16.msra.mxu0 0
        %1201 = vmatprep.subr.bf16.mxu0 0
        %1202 = vmatpush2.bf16.msra.mxu0 %v1072
        %1203 = vmatprep.subr.bf16.mxu0 0
        %1204 = vmatpush2.bf16.msra.mxu0 %v1071
        %1205 = vmatprep.subr.bf16.mxu0 0
        %1206 = vmatpush2.bf16.msra.mxu0 %v1070
        %1207 = vmatprep.subr.bf16.mxu0 0
        %1208 = vmatpush2.bf16.msra.mxu0 %v1069
        %1209 = vmatprep.mubr.bf16.mxu0 %v433
        %1210 = vmatmul.mubr.bf16.gmra.mxu0 %v429
        %v1211 = vpop.f32.mrf.mxu0
        %v1212 = vadd.f32 %v1175, %v1211
        %v1213 = vpop.f32.mrf.mxu0
        %v1214 = vpop.f32.mrf.mxu0
        %v1215 = vadd.f32 %v1176, %v1214
        %v1216 = vpop.f32.mrf.mxu0
        %1217 = vdwg.mxu0
        %1220 = vrot.lane.b32.xlu0 %v1161, 126
        %v1221 = vpop.permute.xlu0 %1220
        %1222 = vrot.lane.b32.xlu0 %v1164, 126
        %v1223 = vpop.permute.xlu0 %1222
        %v1226 = vsel %vm484, %v1221, 0.0
        %v1227 = vsel %vm484, %v1223, 0.0
        %v1228 = vadd.f32 %v1212, %v1226
        %v1229 = vadd.f32 %v1215, %v1227
        %v1230 = vadd.f32 %v1228, %v202
        %v1231 = vadd.f32 %v1229, %v207
        %v1232 = vmax.f32 %v1230, 0.0
        %v1233 = vmax.f32 %v1231, 0.0
        %v1234 = vadd.f32 %v987, %v1232
        %v1235 = vadd.f32 %v988, %v1233
        %v1236 = vld [vmem:[%s165 + $0x80] sm:$0xf]
        %v1237 = vld [vmem:[%s165 + $0x84] sm:$0xf]
        %v1238 = vld [vmem:[%s165 + $0x88] sm:$0xf]
        %v1239 = vld [vmem:[%s165 + $0x8c] sm:$0xf]
        %v1240 = vld [vmem:[%s165 + $0x90] sm:$0xf]
        %v1241 = vld [vmem:[%s165 + $0x94] sm:$0xf]
        %v1242 = vld [vmem:[%s165 + $0x98] sm:$0xf]
        %v1243 = vld [vmem:[%s165 + $0x9c] sm:$0xf]
        %v1244 = vld [vmem:[%s165 + $0xa0] sm:$0xf]
        %v1245 = vld [vmem:[%s165 + $0xa4] sm:$0xf]
        %v1246 = vld [vmem:[%s165 + $0xa8] sm:$0xf]
        %v1247 = vld [vmem:[%s165 + $0xac] sm:$0xf]
        %v1248 = vld [vmem:[%s165 + $0xb0] sm:$0xf]
        %v1249 = vld [vmem:[%s165 + $0xb4] sm:$0xf]
        %v1250 = vld [vmem:[%s165 + $0xb8] sm:$0xf]
        %v1251 = vld [vmem:[%s165 + $0xbc] sm:$0xf]
        %v1252 = vld [vmem:[%s165 + $0xc0] sm:$0xf]
        %v1253 = vld [vmem:[%s165 + $0xc4] sm:$0xf]
        %v1254 = vld [vmem:[%s165 + $0xc8] sm:$0xf]
        %v1255 = vld [vmem:[%s165 + $0xcc] sm:$0xf]
        %v1256 = vld [vmem:[%s165 + $0xd0] sm:$0xf]
        %v1257 = vld [vmem:[%s165 + $0xd4] sm:$0xf]
        %v1258 = vld [vmem:[%s165 + $0xd8] sm:$0xf]
        %v1259 = vld [vmem:[%s165 + $0xdc] sm:$0xf]
        %v1284 = vunpack.c.l.b16 %v1236
        %v1285 = vunpack.c.l.b16 %v1237
        %v1286 = vunpack.c.l.b16 %v1238
        %v1287 = vunpack.c.l.b16 %v1239
        %v1288 = vunpack.c.l.b16 %v1240
        %v1289 = vunpack.c.l.b16 %v1241
        %v1290 = vunpack.c.l.b16 %v1242
        %v1291 = vunpack.c.l.b16 %v1243
        %v1292 = vunpack.c.l.b16 %v1244
        %v1293 = vunpack.c.l.b16 %v1245
        %v1294 = vunpack.c.l.b16 %v1246
        %v1295 = vunpack.c.l.b16 %v1247
        %v1296 = vunpack.c.l.b16 %v1248
        %v1297 = vunpack.c.l.b16 %v1249
        %v1298 = vunpack.c.l.b16 %v1250
        %v1299 = vunpack.c.l.b16 %v1251
        %v1300 = vunpack.c.l.b16 %v1252
        %v1301 = vunpack.c.l.b16 %v1253
        %v1302 = vunpack.c.l.b16 %v1254
        %v1303 = vunpack.c.l.b16 %v1255
        %v1304 = vunpack.c.l.b16 %v1256
        %v1305 = vunpack.c.l.b16 %v1257
        %v1306 = vunpack.c.l.b16 %v1258
        %v1307 = vunpack.c.l.b16 %v1259
        %v1308 = vpack.c.b16 %v1285, %v1284
        %v1309 = vpack.c.b16 %v1287, %v1286
        %v1310 = vpack.c.b16 %v1289, %v1288
        %v1311 = vpack.c.b16 %v1291, %v1290
        %v1312 = vpack.c.b16 %v1293, %v1292
        %v1313 = vpack.c.b16 %v1295, %v1294
        %v1314 = vpack.c.b16 %v1297, %v1296
        %v1315 = vpack.c.b16 %v1299, %v1298
        %v1316 = vpack.c.b16 %v1301, %v1300
        %v1317 = vpack.c.b16 %v1303, %v1302
        %v1318 = vpack.c.b16 %v1305, %v1304
        %v1319 = vpack.c.b16 %v1307, %v1306
        %1332 = vmatprep.subr.bf16.mxu0 0
        %1333 = vmatpush1.bf16.msra.mxu0 %v1315
        %1334 = vmatprep.subr.bf16.mxu0 0
        %1335 = vmatpush1.bf16.msra.mxu0 %v1314
        %1336 = vmatprep.subr.bf16.mxu0 0
        %1337 = vmatpush1.bf16.msra.mxu0 %v1313
        %1338 = vmatprep.subr.bf16.mxu0 0
        %1339 = vmatpush1.bf16.msra.mxu0 %v1312
        %1340 = vmatprep.subr.bf16.mxu0 0
        %1341 = vmatpush1.bf16.msra.mxu0 %v1311
        %1342 = vmatprep.subr.bf16.mxu0 0
        %1343 = vmatpush1.bf16.msra.mxu0 %v1310
        %1344 = vmatprep.subr.bf16.mxu0 0
        %1345 = vmatpush1.bf16.msra.mxu0 %v1309
        %1346 = vmatprep.subr.bf16.mxu0 0
        %1347 = vmatpush1.bf16.msra.mxu0 %v1308
        %1348 = vmatprep.subr.bf16.mxu0 0
        %1349 = vmatpush2.bf16.msra.mxu0 0
        %1350 = vmatprep.subr.bf16.mxu0 0
        %1351 = vmatpush2.bf16.msra.mxu0 0
        %1352 = vmatprep.subr.bf16.mxu0 0
        %1353 = vmatpush2.bf16.msra.mxu0 0
        %1354 = vmatprep.subr.bf16.mxu0 0
        %1355 = vmatpush2.bf16.msra.mxu0 0
        %1356 = vmatprep.subr.bf16.mxu0 0
        %1357 = vmatpush2.bf16.msra.mxu0 %v1319
        %1358 = vmatprep.subr.bf16.mxu0 0
        %1359 = vmatpush2.bf16.msra.mxu0 %v1318
        %1360 = vmatprep.subr.bf16.mxu0 0
        %1361 = vmatpush2.bf16.msra.mxu0 %v1317
        %1362 = vmatprep.subr.bf16.mxu0 0
        %1363 = vmatpush2.bf16.msra.mxu0 %v1316
        %1364 = vmatprep.mubr.bf16.mxu0 %v316
        %1365 = vmatmul.mubr.bf16.gmra.mxu0 %v239
        %v1366 = vpop.f32.mrf.mxu0
        %v1367 = vadd.f32 0.0, %v1366
        %v1368 = vpop.f32.mrf.mxu0
        %v1369 = vpop.f32.mrf.mxu0
        %v1370 = vadd.f32 0.0, %v1369
        %v1371 = vpop.f32.mrf.mxu0
        %1372 = vdwg.mxu0
        %1373 = vmatprep.subr.bf16.mxu0 0
        %1374 = vmatpush1.bf16.msra.mxu0 %v1315
        %1375 = vmatprep.subr.bf16.mxu0 0
        %1376 = vmatpush1.bf16.msra.mxu0 %v1314
        %1377 = vmatprep.subr.bf16.mxu0 0
        %1378 = vmatpush1.bf16.msra.mxu0 %v1313
        %1379 = vmatprep.subr.bf16.mxu0 0
        %1380 = vmatpush1.bf16.msra.mxu0 %v1312
        %1381 = vmatprep.subr.bf16.mxu0 0
        %1382 = vmatpush1.bf16.msra.mxu0 %v1311
        %1383 = vmatprep.subr.bf16.mxu0 0
        %1384 = vmatpush1.bf16.msra.mxu0 %v1310
        %1385 = vmatprep.subr.bf16.mxu0 0
        %1386 = vmatpush1.bf16.msra.mxu0 %v1309
        %1387 = vmatprep.subr.bf16.mxu0 0
        %1388 = vmatpush1.bf16.msra.mxu0 %v1308
        %1389 = vmatprep.subr.bf16.mxu0 0
        %1390 = vmatpush2.bf16.msra.mxu0 0
        %1391 = vmatprep.subr.bf16.mxu0 0
        %1392 = vmatpush2.bf16.msra.mxu0 0
        %1393 = vmatprep.subr.bf16.mxu0 0
        %1394 = vmatpush2.bf16.msra.mxu0 0
        %1395 = vmatprep.subr.bf16.mxu0 0
        %1396 = vmatpush2.bf16.msra.mxu0 0
        %1397 = vmatprep.subr.bf16.mxu0 0
        %1398 = vmatpush2.bf16.msra.mxu0 %v1319
        %1399 = vmatprep.subr.bf16.mxu0 0
        %1400 = vmatpush2.bf16.msra.mxu0 %v1318
        %1401 = vmatprep.subr.bf16.mxu0 0
        %1402 = vmatpush2.bf16.msra.mxu0 %v1317
        %1403 = vmatprep.subr.bf16.mxu0 0
        %1404 = vmatpush2.bf16.msra.mxu0 %v1316
        %1405 = vmatprep.mubr.bf16.mxu0 %v369
        %1406 = vmatmul.mubr.bf16.gmra.mxu0 %v365
        %v1407 = vpop.f32.mrf.mxu0
        %v1408 = vadd.f32 0.0, %v1407
        %v1409 = vpop.f32.mrf.mxu0
        %v1410 = vpop.f32.mrf.mxu0
        %v1411 = vadd.f32 0.0, %v1410
        %v1412 = vpop.f32.mrf.mxu0
        %1413 = vdwg.mxu0
        %1416 = vrot.lane.b32.xlu0 %v1367, 127
        %v1417 = vpop.permute.xlu0 %1416
        %1418 = vrot.lane.b32.xlu0 %v1370, 127
        %v1419 = vpop.permute.xlu0 %1418
        %v1422 = vsel %vm420, %v1417, 0.0
        %v1423 = vsel %vm420, %v1419, 0.0
        %1424 = vmatprep.subr.bf16.mxu0 0
        %1425 = vmatpush1.bf16.msra.mxu0 %v1315
        %1426 = vmatprep.subr.bf16.mxu0 0
        %1427 = vmatpush1.bf16.msra.mxu0 %v1314
        %1428 = vmatprep.subr.bf16.mxu0 0
        %1429 = vmatpush1.bf16.msra.mxu0 %v1313
        %1430 = vmatprep.subr.bf16.mxu0 0
        %1431 = vmatpush1.bf16.msra.mxu0 %v1312
        %1432 = vmatprep.subr.bf16.mxu0 0
        %1433 = vmatpush1.bf16.msra.mxu0 %v1311
        %1434 = vmatprep.subr.bf16.mxu0 0
        %1435 = vmatpush1.bf16.msra.mxu0 %v1310
        %1436 = vmatprep.subr.bf16.mxu0 0
        %1437 = vmatpush1.bf16.msra.mxu0 %v1309
        %1438 = vmatprep.subr.bf16.mxu0 0
        %1439 = vmatpush1.bf16.msra.mxu0 %v1308
        %1440 = vmatprep.subr.bf16.mxu0 0
        %1441 = vmatpush2.bf16.msra.mxu0 0
        %1442 = vmatprep.subr.bf16.mxu0 0
        %1443 = vmatpush2.bf16.msra.mxu0 0
        %1444 = vmatprep.subr.bf16.mxu0 0
        %1445 = vmatpush2.bf16.msra.mxu0 0
        %1446 = vmatprep.subr.bf16.mxu0 0
        %1447 = vmatpush2.bf16.msra.mxu0 0
        %1448 = vmatprep.subr.bf16.mxu0 0
        %1449 = vmatpush2.bf16.msra.mxu0 %v1319
        %1450 = vmatprep.subr.bf16.mxu0 0
        %1451 = vmatpush2.bf16.msra.mxu0 %v1318
        %1452 = vmatprep.subr.bf16.mxu0 0
        %1453 = vmatpush2.bf16.msra.mxu0 %v1317
        %1454 = vmatprep.subr.bf16.mxu0 0
        %1455 = vmatpush2.bf16.msra.mxu0 %v1316
        %1456 = vmatprep.mubr.bf16.mxu0 %v433
        %1457 = vmatmul.mubr.bf16.gmra.mxu0 %v429
        %v1458 = vpop.f32.mrf.mxu0
        %v1459 = vadd.f32 %v1422, %v1458
        %v1460 = vpop.f32.mrf.mxu0
        %v1461 = vpop.f32.mrf.mxu0
        %v1462 = vadd.f32 %v1423, %v1461
        %v1463 = vpop.f32.mrf.mxu0
        %1464 = vdwg.mxu0
        %1467 = vrot.lane.b32.xlu0 %v1408, 126
        %v1468 = vpop.permute.xlu0 %1467
        %1469 = vrot.lane.b32.xlu0 %v1411, 126
        %v1470 = vpop.permute.xlu0 %1469
        %v1473 = vsel %vm484, %v1468, 0.0
        %v1474 = vsel %vm484, %v1470, 0.0
        %v1475 = vadd.f32 %v1459, %v1473
        %v1476 = vadd.f32 %v1462, %v1474
        %v1477 = vadd.f32 %v1475, %v202
        %v1478 = vadd.f32 %v1476, %v207
        %v1479 = vmax.f32 %v1477, 0.0
        %v1480 = vmax.f32 %v1478, 0.0
        %v1481 = vadd.f32 %v1234, %v1479
        %v1482 = vadd.f32 %v1235, %v1480
        %v1483 = vld [vmem:[%s165 + $0xa0] sm:$0xf]
        %v1484 = vld [vmem:[%s165 + $0xa4] sm:$0xf]
        %v1485 = vld [vmem:[%s165 + $0xa8] sm:$0xf]
        %v1486 = vld [vmem:[%s165 + $0xac] sm:$0xf]
        %v1487 = vld [vmem:[%s165 + $0xb0] sm:$0xf]
        %v1488 = vld [vmem:[%s165 + $0xb4] sm:$0xf]
        %v1489 = vld [vmem:[%s165 + $0xb8] sm:$0xf]
        %v1490 = vld [vmem:[%s165 + $0xbc] sm:$0xf]
        %v1491 = vld [vmem:[%s165 + $0xc0] sm:$0xf]
        %v1492 = vld [vmem:[%s165 + $0xc4] sm:$0xf]
        %v1493 = vld [vmem:[%s165 + $0xc8] sm:$0xf]
        %v1494 = vld [vmem:[%s165 + $0xcc] sm:$0xf]
        %v1495 = vld [vmem:[%s165 + $0xd0] sm:$0xf]
        %v1496 = vld [vmem:[%s165 + $0xd4] sm:$0xf]
        %v1497 = vld [vmem:[%s165 + $0xd8] sm:$0xf]
        %v1498 = vld [vmem:[%s165 + $0xdc] sm:$0xf]
        %v1499 = vld [vmem:[%s165 + $0xe0] sm:$0xf]
        %v1500 = vld [vmem:[%s165 + $0xe4] sm:$0xf]
        %v1501 = vld [vmem:[%s165 + $0xe8] sm:$0xf]
        %v1502 = vld [vmem:[%s165 + $0xec] sm:$0xf]
        %v1503 = vld [vmem:[%s165 + $0xf0] sm:$0xf]
        %v1504 = vld [vmem:[%s165 + $0xf4] sm:$0xf]
        %v1505 = vld [vmem:[%s165 + $0xf8] sm:$0xf]
        %v1506 = vld [vmem:[%s165 + $0xfc] sm:$0xf]
        %v1531 = vunpack.c.l.b16 %v1483
        %v1532 = vunpack.c.l.b16 %v1484
        %v1533 = vunpack.c.l.b16 %v1485
        %v1534 = vunpack.c.l.b16 %v1486
        %v1535 = vunpack.c.l.b16 %v1487
        %v1536 = vunpack.c.l.b16 %v1488
        %v1537 = vunpack.c.l.b16 %v1489
        %v1538 = vunpack.c.l.b16 %v1490
        %v1539 = vunpack.c.l.b16 %v1491
        %v1540 = vunpack.c.l.b16 %v1492
        %v1541 = vunpack.c.l.b16 %v1493
        %v1542 = vunpack.c.l.b16 %v1494
        %v1543 = vunpack.c.l.b16 %v1495
        %v1544 = vunpack.c.l.b16 %v1496
        %v1545 = vunpack.c.l.b16 %v1497
        %v1546 = vunpack.c.l.b16 %v1498
        %v1547 = vunpack.c.l.b16 %v1499
        %v1548 = vunpack.c.l.b16 %v1500
        %v1549 = vunpack.c.l.b16 %v1501
        %v1550 = vunpack.c.l.b16 %v1502
        %v1551 = vunpack.c.l.b16 %v1503
        %v1552 = vunpack.c.l.b16 %v1504
        %v1553 = vunpack.c.l.b16 %v1505
        %v1554 = vunpack.c.l.b16 %v1506
        %v1555 = vpack.c.b16 %v1532, %v1531
        %v1556 = vpack.c.b16 %v1534, %v1533
        %v1557 = vpack.c.b16 %v1536, %v1535
        %v1558 = vpack.c.b16 %v1538, %v1537
        %v1559 = vpack.c.b16 %v1540, %v1539
        %v1560 = vpack.c.b16 %v1542, %v1541
        %v1561 = vpack.c.b16 %v1544, %v1543
        %v1562 = vpack.c.b16 %v1546, %v1545
        %v1563 = vpack.c.b16 %v1548, %v1547
        %v1564 = vpack.c.b16 %v1550, %v1549
        %v1565 = vpack.c.b16 %v1552, %v1551
        %v1566 = vpack.c.b16 %v1554, %v1553
        %1579 = vmatprep.subr.bf16.mxu0 0
        %1580 = vmatpush1.bf16.msra.mxu0 %v1562
        %1581 = vmatprep.subr.bf16.mxu0 0
        %1582 = vmatpush1.bf16.msra.mxu0 %v1561
        %1583 = vmatprep.subr.bf16.mxu0 0
        %1584 = vmatpush1.bf16.msra.mxu0 %v1560
        %1585 = vmatprep.subr.bf16.mxu0 0
        %1586 = vmatpush1.bf16.msra.mxu0 %v1559
        %1587 = vmatprep.subr.bf16.mxu0 0
        %1588 = vmatpush1.bf16.msra.mxu0 %v1558
        %1589 = vmatprep.subr.bf16.mxu0 0
        %1590 = vmatpush1.bf16.msra.mxu0 %v1557
        %1591 = vmatprep.subr.bf16.mxu0 0
        %1592 = vmatpush1.bf16.msra.mxu0 %v1556
        %1593 = vmatprep.subr.bf16.mxu0 0
        %1594 = vmatpush1.bf16.msra.mxu0 %v1555
        %1595 = vmatprep.subr.bf16.mxu0 0
        %1596 = vmatpush2.bf16.msra.mxu0 0
        %1597 = vmatprep.subr.bf16.mxu0 0
        %1598 = vmatpush2.bf16.msra.mxu0 0
        %1599 = vmatprep.subr.bf16.mxu0 0
        %1600 = vmatpush2.bf16.msra.mxu0 0
        %1601 = vmatprep.subr.bf16.mxu0 0
        %1602 = vmatpush2.bf16.msra.mxu0 0
        %1603 = vmatprep.subr.bf16.mxu0 0
        %1604 = vmatpush2.bf16.msra.mxu0 %v1566
        %1605 = vmatprep.subr.bf16.mxu0 0
        %1606 = vmatpush2.bf16.msra.mxu0 %v1565
        %1607 = vmatprep.subr.bf16.mxu0 0
        %1608 = vmatpush2.bf16.msra.mxu0 %v1564
        %1609 = vmatprep.subr.bf16.mxu0 0
        %1610 = vmatpush2.bf16.msra.mxu0 %v1563
        %1611 = vmatprep.mubr.bf16.mxu0 %v316
        %1612 = vmatmul.mubr.bf16.gmra.mxu0 %v239
        %v1613 = vpop.f32.mrf.mxu0
        %v1614 = vadd.f32 0.0, %v1613
        %v1615 = vpop.f32.mrf.mxu0
        %v1616 = vpop.f32.mrf.mxu0
        %v1617 = vadd.f32 0.0, %v1616
        %v1618 = vpop.f32.mrf.mxu0
        %1619 = vdwg.mxu0
        %1620 = vmatprep.subr.bf16.mxu0 0
        %1621 = vmatpush1.bf16.msra.mxu0 %v1562
        %1622 = vmatprep.subr.bf16.mxu0 0
        %1623 = vmatpush1.bf16.msra.mxu0 %v1561
        %1624 = vmatprep.subr.bf16.mxu0 0
        %1625 = vmatpush1.bf16.msra.mxu0 %v1560
        %1626 = vmatprep.subr.bf16.mxu0 0
        %1627 = vmatpush1.bf16.msra.mxu0 %v1559
        %1628 = vmatprep.subr.bf16.mxu0 0
        %1629 = vmatpush1.bf16.msra.mxu0 %v1558
        %1630 = vmatprep.subr.bf16.mxu0 0
        %1631 = vmatpush1.bf16.msra.mxu0 %v1557
        %1632 = vmatprep.subr.bf16.mxu0 0
        %1633 = vmatpush1.bf16.msra.mxu0 %v1556
        %1634 = vmatprep.subr.bf16.mxu0 0
        %1635 = vmatpush1.bf16.msra.mxu0 %v1555
        %1636 = vmatprep.subr.bf16.mxu0 0
        %1637 = vmatpush2.bf16.msra.mxu0 0
        %1638 = vmatprep.subr.bf16.mxu0 0
        %1639 = vmatpush2.bf16.msra.mxu0 0
        %1640 = vmatprep.subr.bf16.mxu0 0
        %1641 = vmatpush2.bf16.msra.mxu0 0
        %1642 = vmatprep.subr.bf16.mxu0 0
        %1643 = vmatpush2.bf16.msra.mxu0 0
        %1644 = vmatprep.subr.bf16.mxu0 0
        %1645 = vmatpush2.bf16.msra.mxu0 %v1566
        %1646 = vmatprep.subr.bf16.mxu0 0
        %1647 = vmatpush2.bf16.msra.mxu0 %v1565
        %1648 = vmatprep.subr.bf16.mxu0 0
        %1649 = vmatpush2.bf16.msra.mxu0 %v1564
        %1650 = vmatprep.subr.bf16.mxu0 0
        %1651 = vmatpush2.bf16.msra.mxu0 %v1563
        %1652 = vmatprep.mubr.bf16.mxu0 %v369
        %1653 = vmatmul.mubr.bf16.gmra.mxu0 %v365
        %v1654 = vpop.f32.mrf.mxu0
        %v1655 = vadd.f32 0.0, %v1654
        %v1656 = vpop.f32.mrf.mxu0
        %v1657 = vpop.f32.mrf.mxu0
        %v1658 = vadd.f32 0.0, %v1657
        %v1659 = vpop.f32.mrf.mxu0
        %1660 = vdwg.mxu0
        %1663 = vrot.lane.b32.xlu0 %v1614, 127
        %v1664 = vpop.permute.xlu0 %1663
        %1665 = vrot.lane.b32.xlu0 %v1617, 127
        %v1666 = vpop.permute.xlu0 %1665
        %v1669 = vsel %vm420, %v1664, 0.0
        %v1670 = vsel %vm420, %v1666, 0.0
        %1671 = vmatprep.subr.bf16.mxu0 0
        %1672 = vmatpush1.bf16.msra.mxu0 %v1562
        %1673 = vmatprep.subr.bf16.mxu0 0
        %1674 = vmatpush1.bf16.msra.mxu0 %v1561
        %1675 = vmatprep.subr.bf16.mxu0 0
        %1676 = vmatpush1.bf16.msra.mxu0 %v1560
        %1677 = vmatprep.subr.bf16.mxu0 0
        %1678 = vmatpush1.bf16.msra.mxu0 %v1559
        %1679 = vmatprep.subr.bf16.mxu0 0
        %1680 = vmatpush1.bf16.msra.mxu0 %v1558
        %1681 = vmatprep.subr.bf16.mxu0 0
        %1682 = vmatpush1.bf16.msra.mxu0 %v1557
        %1683 = vmatprep.subr.bf16.mxu0 0
        %1684 = vmatpush1.bf16.msra.mxu0 %v1556
        %1685 = vmatprep.subr.bf16.mxu0 0
        %1686 = vmatpush1.bf16.msra.mxu0 %v1555
        %1687 = vmatprep.subr.bf16.mxu0 0
        %1688 = vmatpush2.bf16.msra.mxu0 0
        %1689 = vmatprep.subr.bf16.mxu0 0
        %1690 = vmatpush2.bf16.msra.mxu0 0
        %1691 = vmatprep.subr.bf16.mxu0 0
        %1692 = vmatpush2.bf16.msra.mxu0 0
        %1693 = vmatprep.subr.bf16.mxu0 0
        %1694 = vmatpush2.bf16.msra.mxu0 0
        %1695 = vmatprep.subr.bf16.mxu0 0
        %1696 = vmatpush2.bf16.msra.mxu0 %v1566
        %1697 = vmatprep.subr.bf16.mxu0 0
        %1698 = vmatpush2.bf16.msra.mxu0 %v1565
        %1699 = vmatprep.subr.bf16.mxu0 0
        %1700 = vmatpush2.bf16.msra.mxu0 %v1564
        %1701 = vmatprep.subr.bf16.mxu0 0
        %1702 = vmatpush2.bf16.msra.mxu0 %v1563
        %1703 = vmatprep.mubr.bf16.mxu0 %v433
        %1704 = vmatmul.mubr.bf16.gmra.mxu0 %v429
        %v1705 = vpop.f32.mrf.mxu0
        %v1706 = vadd.f32 %v1669, %v1705
        %v1707 = vpop.f32.mrf.mxu0
        %v1708 = vpop.f32.mrf.mxu0
        %v1709 = vadd.f32 %v1670, %v1708
        %v1710 = vpop.f32.mrf.mxu0
        %1711 = vdwg.mxu0
        %1714 = vrot.lane.b32.xlu0 %v1655, 126
        %v1715 = vpop.permute.xlu0 %1714
        %1716 = vrot.lane.b32.xlu0 %v1658, 126
        %v1717 = vpop.permute.xlu0 %1716
        %v1720 = vsel %vm484, %v1715, 0.0
        %v1721 = vsel %vm484, %v1717, 0.0
        %v1722 = vadd.f32 %v1706, %v1720
        %v1723 = vadd.f32 %v1709, %v1721
        %v1724 = vadd.f32 %v1722, %v202
        %v1725 = vadd.f32 %v1723, %v207
        %v1726 = vmax.f32 %v1724, 0.0
        %v1727 = vmax.f32 %v1725, 0.0
        %v1728 = vadd.f32 %v1481, %v1726
        %v1729 = vadd.f32 %v1482, %v1727
        %v1730 = vmul.f32 %v1728, 0.16666667
        %v1731 = vmul.f32 %v1729, 0.16666667
        %1732 = vst [vmem:[%s187] sm:$0xff] %v1730
        %1733 = vst [vmem:[%s187 + $0x8] sm:$0x1] %v1731
        %s1734 = sand.u32 %s96, 1
        %s1735 = scalar_lea.sflag [#allocation4], %s1734
        %s1736 = sand.u32 %s96, 1
        %s1737 = smul.addr %s1736, 16
        %s1738 = scalar_lea.vmem [#allocation5], %s1737
        // Predicated region
        $region37: #{tpu_custom_call.1} parent=31 // pred_check
          %p1739 = pneg %p106
        $region38: #{tpu_custom_call.1} parent=31 // pred_check_branch
          %1741 = sbr.rel (%p1739) target = $region40
        $region39: #{tpu_custom_call.1} parent=31 // pred_region
          %s1743 = ssub.s32 256, 256
          %1744 = vsyncadd %s1735, %s1743
          %s1745 = smul.addr %s20, 128
          %s1746 = scalar_lea.hbm %s3, %s1745
          %s1747 = sshll.u32 %s1738, 4
          %s1748 = int_to_ptr.vmem [resolvable:$true] %s1747
          %1753 = dma.vmem_to_hbm [thread:$0]  %s1748, 256, %s1746, %s1735, 128, 384, 8
        $region40: #{tpu_custom_call.1} parent=31 // pred_fallthru
          _
      $region32: #{tpu_custom_call.1} parent=5 // pred_fallthru
        _
      %p1754 = scmp.le.s32.totalorder 2, %s15
      // Predicated region
      $region41: #{tpu_custom_call.1} parent=5 // pred_check
        %p1755 = pneg %p1754
      $region42: #{tpu_custom_call.1} parent=5 // pred_check_branch
        %1757 = sbr.rel (%p1755) target = $region44
      $region43: #{tpu_custom_call.1} parent=5 // pred_region
        %s1758 = ssub.s32 %s15, 2
        // Predicated region
        $region45: #{tpu_custom_call.1} parent=43 // pred_check
          %p1759 = pneg %p112
        $region46: #{tpu_custom_call.1} parent=43 // pred_check_branch
          %1761 = sbr.rel (%p1759) target = $region48
        $region47: #{tpu_custom_call.1} parent=43 // pred_region
          %s1762 = sand.u32 %s97, 1
          %s1763 = scalar_lea.sflag [#allocation4], %s1762
          %s1764 = sand.u32 %s97, 1
          %s1765 = smul.addr %s1764, 16
          %s1766 = scalar_lea.vmem [#allocation5], %s1765
          %1767 = dma.done %s1763, 256
        $region48: #{tpu_custom_call.1} parent=43 // pred_fallthru
          _
      $region44: #{tpu_custom_call.1} parent=5 // pred_fallthru
        _
    $region6: #{tpu_custom_call.1} parent=1 // loop_footer
      %s19 = sadd.s32 1, %s15
    $region7: #{tpu_custom_call.1} parent=1 // loop_footer_branch
      %14 = sbr.rel target = $region3
    $region8: #{tpu_custom_call.1} parent=1 // loop_exit
      _
    %1768 = vsyncpa [#allocation3], 1
    %s1769 = scalar_lea.sflag [#allocation3], 1
    %1770 = vsyncpa %s1769, 1
    %1771 = vsyncpa [#allocation4], 1
    %s1772 = scalar_lea.sflag [#allocation4], 1
    %1773 = vsyncpa %s1772, 1

</llo_original>
